<compile_context>
chip_gen: v7x
topology: tpu7x:2x2x1
jax: 0.10.0
libtpu: 0.0.40
codegen_flags: <defaults>
</compile_context>

<pallas_src>
from types import SimpleNamespace

import jax
import jax.numpy as jnp
from jax import lax
from jax.experimental import pallas as pl
from jax.experimental.pallas import tpu as pltpu


def _round_up(x, m):
    return (x + m - 1) // m * m


def _choose_tiling(m, tm_target=1024):
    """Pick (TM, M_pad): TM multiple of 8, M_pad multiple of TM, >=2 tiles if possible."""
    tm = min(tm_target, _round_up(m, 8))
    m_pad = _round_up(m, tm)
    # v7x has 2 TensorCores sharing the "parallel" grid axis; avoid a 1-tile grid.
    if m_pad // tm < 2 and m_pad >= 16:
        tm = _round_up(m_pad // 2, 8)
        m_pad = _round_up(m, tm)
    return tm, m_pad


# ----------------------------------------------------------------------------
# Fused Pallas kernel: whole FusionMLP hot path in one call
# ----------------------------------------------------------------------------
def _make_fused_kernel(n_graph, n_fusion, fusion_dim):
    """Build the fused kernel for the given (static) layer counts."""

    def kernel(*refs):
        it = iter(refs)
        x3_ref = next(it)                                     # (2, TM, D) bf16 fwd/bwd tiles
        graph = [tuple(next(it) for _ in range(4)) for _ in range(n_graph)]
        wh_ref = next(it)                                     # (D, 2*fdim) bf16 [Wf | Wb]
        bh_ref = next(it)                                     # (1, 2*fdim) f32
        fusion = [tuple(next(it) for _ in range(4)) for _ in range(n_fusion)]
        wo_ref = next(it)                                     # (2*fdim, OUT_PAD) bf16
        bo_ref = next(it)                                     # (1, OUT_PAD) f32
        hid_ref = next(it)                                    # out: (TM, 2*fdim) f32
        pred_ref = next(it)                                   # out: (TM, OUT_PAD) f32

        tm = x3_ref.shape[1]
        d = x3_ref.shape[2]

        # Merge fwd/bwd planes into one 2*TM-row LHS.  Pure leading-dim merge over an
        # (8,128)-aligned trailing tile -> layout-free, no VMEM copy (was concatenate).
        x_b = x3_ref[...].reshape(2 * tm, d)                  # bf16 (2*TM, D)
        x_f32 = x_b.astype(jnp.float32)                       # residual carry in f32

        def mlp_block(xb, xf32, w1_ref, b1_ref, w2_ref, b2_ref):
            # relu(x@W1 + b1) @ W2 + b2 + x  with bf16 MXU operands, f32 accumulation.
            h = jnp.maximum(
                jnp.dot(xb, w1_ref[...], preferred_element_type=jnp.float32) + b1_ref[...],
                0.0)
            y = (jnp.dot(h.astype(jnp.bfloat16), w2_ref[...],
                         preferred_element_type=jnp.float32)
                 + b2_ref[...] + xf32)
            return y.astype(jnp.bfloat16), y

        # fusion_graph_model: MultiLayerPerceptron blocks (dropout = identity, eval).
        for (w1, b1, w2, b2) in graph:
            x_b, x_f32 = mlp_block(x_b, x_f32, w1, b1, w2, b2)

        # Combined forward/backward heads: one lane-dense [D, 2*fdim] bf16 matmul.
        y = jnp.dot(x_b, wh_ref[...], preferred_element_type=jnp.float32) + bh_ref[...]
        f_total = y.shape[-1]                                  # 2 * fusion_dim
        # hidden = cat([hf, hb], dim=-1):
        #   lanes [0, fdim)       <- forward rows' left half,
        #   lanes [fdim, 2*fdim)  <- backward rows' right half.
        lane = lax.broadcasted_iota(jnp.int32, (tm, f_total), 1)
        hidden_f32 = jnp.where(lane < fusion_dim, y[:tm, :], y[tm:, :])   # (TM, 2*fdim)
        hid_ref[...] = hidden_f32.astype(hid_ref.dtype)
        hidden_b = hidden_f32.astype(jnp.bfloat16)

        # fusion_model MLP blocks.
        for (v1, c1, v2, c2) in fusion:
            hidden_b, hidden_f32 = mlp_block(hidden_b, hidden_f32, v1, c1, v2, c2)

        # Final output linear (padded to 128 lanes -> unmasked lane-dense store).
        pred = (jnp.dot(hidden_b, wo_ref[...], preferred_element_type=jnp.float32)
                + bo_ref[...])
        pred_ref[...] = pred.astype(pred_ref.dtype)

    return kernel


def fused_fusion_mlp(stacked, graph_blocks, wh, bh, fusion_blocks, wo_pad, bo_pad, *, tm):
    """One pallas_call for the whole FusionMLP hot path.

    stacked:  (2, M_pad, D) bf16  -- [0]=forward_emb, [1]=backward_emb (rows padded)
    wo_pad:   (2*fusion_dim, OUT_PAD) with OUT_PAD a multiple of 128
    returns:  hidden (M_pad, 2*fusion_dim) f32, predict (M_pad, OUT_PAD) f32
    """
    two, m_pad, d = stacked.shape
    assert two == 2
    f_total = wh.shape[1]                  # 2 * fusion_dim
    out_pad = wo_pad.shape[1]
    assert m_pad % tm == 0 and tm % 8 == 0
    n_tiles = m_pad // tm

    const = lambda i: (0, 0)               # weights/biases stay resident across the grid
    bf16 = lambda a: a.astype(jnp.bfloat16)
    f32 = lambda a: a.astype(jnp.float32)

    in_specs = [pl.BlockSpec((2, tm, d), lambda i: (0, i, 0))]
    operands = [stacked]
    for (w1, b1, w2, b2) in graph_blocks:
        in_specs += [pl.BlockSpec((d, d), const), pl.BlockSpec((1, d), const),
                     pl.BlockSpec((d, d), const), pl.BlockSpec((1, d), const)]
        operands += [bf16(w1), f32(b1).reshape(1, d), bf16(w2), f32(b2).reshape(1, d)]
    in_specs += [pl.BlockSpec((d, f_total), const), pl.BlockSpec((1, f_total), const)]
    operands += [bf16(wh), f32(bh).reshape(1, f_total)]
    for (v1, c1, v2, c2) in fusion_blocks:
        in_specs += [pl.BlockSpec((f_total, f_total), const), pl.BlockSpec((1, f_total), const),
                     pl.BlockSpec((f_total, f_total), const), pl.BlockSpec((1, f_total), const)]
        operands += [bf16(v1), f32(c1).reshape(1, f_total),
                     bf16(v2), f32(c2).reshape(1, f_total)]
    in_specs += [pl.BlockSpec((f_total, out_pad), const), pl.BlockSpec((1, out_pad), const)]
    operands += [bf16(wo_pad), f32(bo_pad).reshape(1, out_pad)]

    kernel = _make_fused_kernel(len(graph_blocks), len(fusion_blocks), f_total // 2)

    hid, pred = pl.pallas_call(
        kernel,
        out_shape=(jax.ShapeDtypeStruct((m_pad, f_total), jnp.float32),
                   jax.ShapeDtypeStruct((m_pad, out_pad), jnp.float32)),
        grid=(n_tiles,),
        in_specs=in_specs,
        out_specs=(pl.BlockSpec((tm, f_total), lambda i: (i, 0)),
                   pl.BlockSpec((tm, out_pad), lambda i: (i, 0))),
        compiler_params=pltpu.CompilerParams(
            dimension_semantics=("parallel",)),    # v7x: shard M tiles over both TCs
    )(*operands)
    return hid, pred


# ----------------------------------------------------------------------------
# Parameter init (deterministic, synthetic)
# ----------------------------------------------------------------------------
def init_linear(key, din, dout):
    k1, k2 = jax.random.split(key)
    w = jax.random.normal(k1, (din, dout), jnp.float32) * (1.0 / jnp.sqrt(din))
    b = jax.random.normal(k2, (dout,), jnp.float32) * 0.01
    return w, b


def init_mlp_block(key, d):
    k1, k2 = jax.random.split(key)
    return init_linear(k1, d, d) + init_linear(k2, d, d)  # (w1, b1, w2, b2)


def init_params(key, cfg, input_dim, hidden_dim, out_dim, graph_num):
    keys = jax.random.split(key, 16)
    params = {}
    params["time_in_day_emb"] = (
        jax.random.normal(keys[0], (cfg.time_of_day_size, cfg.temp_dim), jnp.float32) * 0.1)
    params["day_in_week_emb"] = (
        jax.random.normal(keys[1], (cfg.day_of_week_size, cfg.temp_dim), jnp.float32) * 0.1)
    params["fusion_graph_model"] = [
        init_mlp_block(keys[2 + i], hidden_dim) for i in range(cfg.fusion_num_layer)]
    params["fusion_forward_linear"] = init_linear(keys[6], hidden_dim, cfg.fusion_dim)
    params["fusion_backward_linear"] = init_linear(keys[7], hidden_dim, cfg.fusion_dim)
    fdim = graph_num * cfg.fusion_dim
    params["fusion_model_blocks"] = [
        init_mlp_block(keys[8 + i], fdim) for i in range(cfg.fusion_num_layer)]
    params["fusion_model_out"] = init_linear(keys[12], fdim, out_dim)
    return params


# ----------------------------------------------------------------------------
# FusionMLP forward (embedding gather / concat glue in JAX, hot path in Pallas)
# ----------------------------------------------------------------------------
def fusion_mlp_forward(params, cfg, x_enc, x_mark_enc, time_series_emb, predict_emb,
                       node_forward_emb, node_backward_emb,
                       hidden_forward_emb=None, hidden_backward_emb=None):
    B = x_enc.shape[0]
    N = x_enc.shape[-1]
    M = B * N
    fdim = cfg.fusion_dim

    # ---- temporal embeddings (gather = glue) ----
    tem_emb = []
    if cfg.if_time_in_day:
        tid = (x_mark_enc[..., 0] + 0.5) * (cfg.time_of_day_size - 1)   # [B, L]
        idx = jnp.broadcast_to(tid[:, -1][:, None], (B, N)).astype(jnp.int32)
        idx = jnp.clip(idx, 0, cfg.time_of_day_size - 1)
        tem_emb.append(params["time_in_day_emb"][idx])                  # [B, N, temp_dim]
    if cfg.if_day_in_week:
        diw = (x_mark_enc[..., 1] + 0.5) * (cfg.day_of_week_size - 1)
        idx = jnp.broadcast_to(diw[:, -1][:, None], (B, N)).astype(jnp.int32)
        idx = jnp.clip(idx, 0, cfg.day_of_week_size - 1)
        tem_emb.append(params["day_in_week_emb"][idx])

    # first=True: feedback-attention branch is skipped.
    # TODO(synk): MultiheadAttention feedback path (first=False, if_feedback=True) not implemented.

    # graph_num > 1 path: assemble the two branch inputs once (shared ts+pr+tem prefix).
    forward_emb = jnp.concatenate(
        time_series_emb + predict_emb + node_forward_emb + tem_emb, axis=2)   # [B,N,D]
    backward_emb = jnp.concatenate(
        time_series_emb + predict_emb + node_backward_emb + tem_emb, axis=2)  # [B,N,D]
    D = forward_emb.shape[-1]

    # M tiling (pad M to a multiple of TM; TM multiple of 8, target 1024, >=2 tiles).
    TM, M_pad = _choose_tiling(M, tm_target=1024)

    def flat_pad(x3d):
        x2d = x3d.reshape(M, D)
        if M_pad != M:
            x2d = jnp.pad(x2d, ((0, M_pad - M), (0, 0)))
        return x2d

    # bf16 activations into the kernel (halves input DMA bytes; f32 accumulation inside).
    stacked = jnp.stack([flat_pad(forward_emb), flat_pad(backward_emb)],
                        axis=0).astype(jnp.bfloat16)                           # [2,M_pad,D]

    # Concatenate the two head linears into one lane-dense [D, 2*fdim] weight.
    wf, bf = params["fusion_forward_linear"]
    wb, bb = params["fusion_backward_linear"]
    wh = jnp.concatenate([wf, wb], axis=1)         # [D, 2*fdim]
    bh = jnp.concatenate([bf, bb], axis=0)         # [2*fdim]

    # Pad the output linear to a 128-lane multiple so the pred store is lane-dense.
    wo, bo = params["fusion_model_out"]
    out_dim = wo.shape[1]
    out_pad = _round_up(out_dim, 128)
    wo_pad = jnp.pad(wo, ((0, 0), (0, out_pad - out_dim)))
    bo_pad = jnp.pad(bo, ((0, out_pad - out_dim),))

    hid_pad, pred_pad = fused_fusion_mlp(
        stacked, params["fusion_graph_model"], wh, bh,
        params["fusion_model_blocks"], wo_pad, bo_pad, tm=TM)

    hid = hid_pad[:M]                               # [M, 2*fdim]
    pred = pred_pad[:M, :out_dim]                   # [M, out_dim]
    hidden_forward = [hid[:, :fdim].reshape(B, N, fdim)]
    hidden_backward = [hid[:, fdim:].reshape(B, N, fdim)]
    predict = pred.reshape(B, N, out_dim)

    return predict, hidden_forward, hidden_backward, node_forward_emb, node_backward_emb


# ----------------------------------------------------------------------------
# pure-JAX f32 reference for validation
# ----------------------------------------------------------------------------
def _ref_forward(params, cfg, *args):
    def blk(x, w1, b1, w2, b2):
        return jnp.maximum(x @ w1 + b1, 0.0) @ w2 + b2 + x

    (x_enc, x_mark_enc, ts, pr, nf, nb) = args
    B, N = x_enc.shape[0], x_enc.shape[-1]
    tem = []
    tid = (x_mark_enc[..., 0] + 0.5) * (cfg.time_of_day_size - 1)
    tem.append(params["time_in_day_emb"][
        jnp.clip(jnp.broadcast_to(tid[:, -1][:, None], (B, N)).astype(jnp.int32),
                 0, cfg.time_of_day_size - 1)])
    diw = (x_mark_enc[..., 1] + 0.5) * (cfg.day_of_week_size - 1)
    tem.append(params["day_in_week_emb"][
        jnp.clip(jnp.broadcast_to(diw[:, -1][:, None], (B, N)).astype(jnp.int32),
                 0, cfg.day_of_week_size - 1)])

    def run(x, blocks):
        for (w1, b1, w2, b2) in blocks:
            x = blk(x, w1, b1, w2, b2)
        return x

    fe = jnp.concatenate(ts + pr + nf + tem, axis=2)
    hf = run(fe, params["fusion_graph_model"]) @ params["fusion_forward_linear"][0] \
        + params["fusion_forward_linear"][1]
    be = jnp.concatenate(ts + pr + nb + tem, axis=2)
    hb = run(be, params["fusion_graph_model"]) @ params["fusion_backward_linear"][0] \
        + params["fusion_backward_linear"][1]
    h = jnp.concatenate([hf, hb], axis=2)
    h = run(h, params["fusion_model_blocks"])
    pred = h @ params["fusion_model_out"][0] + params["fusion_model_out"][1]
    return pred, hf, hb


if __name__ == "__main__":
    cfg = SimpleNamespace(
        fusion_num_layer=2, fusion_dim=64, fusion_dropout=0.2,
        if_forward=True, if_backward=True, node_dim=32, nhead=2,
        if_feedback=False, if_time_in_day=True, if_day_in_week=True,
        if_day_in_month=False, if_day_in_year=False,
        temp_dim=16, time_of_day_size=48, day_of_week_size=7,
        day_of_month_size=31, day_of_year_size=366,
    )
    B, L, N = 2, 8, 16
    d_ts, d_pred = 32, 32
    # input_dim = d_ts + d_pred + node_dim + 2*temp_dim = 128 (= hidden_dim, residual constraint)
    input_dim = hidden_dim = d_ts + d_pred + cfg.node_dim + 2 * cfg.temp_dim
    out_dim = 32
    graph_num = 2

    key = jax.random.PRNGKey(0)
    kp, k1, k2, k3, k4, k5, k6 = jax.random.split(key, 7)
    params = init_params(kp, cfg, input_dim, hidden_dim, out_dim, graph_num)

    x_enc = jax.random.normal(k1, (B, L, N), jnp.float32)
    x_mark_enc = jax.random.uniform(k2, (B, L, 4), jnp.float32, minval=-0.5, maxval=0.4999)
    time_series_emb = [jax.random.normal(k3, (B, N, d_ts), jnp.float32)]
    predict_emb = [jax.random.normal(k4, (B, N, d_pred), jnp.float32)]
    node_forward_emb = [jax.random.normal(k5, (B, N, cfg.node_dim), jnp.float32)]
    node_backward_emb = [jax.random.normal(k6, (B, N, cfg.node_dim), jnp.float32)]

    outs = fusion_mlp_forward(params, cfg, x_enc, x_mark_enc, time_series_emb,
                              predict_emb, node_forward_emb, node_backward_emb,
                              None, None)
    predict = jax.block_until_ready(outs[0])
    hf_out, hb_out = outs[1][0], outs[2][0]
    assert predict.shape == (B, N, out_dim), predict.shape
    assert hf_out.shape == (B, N, cfg.fusion_dim)
    assert hb_out.shape == (B, N, cfg.fusion_dim)

    ref_pred, ref_hf, ref_hb = _ref_forward(params, cfg, x_enc, x_mark_enc, time_series_emb,
                                            predict_emb, node_forward_emb, node_backward_emb)
    # bf16 MXU operands with f32 accumulation vs f32 reference: loosened tolerance.
    ATOL, RTOL = 1e-1, 3e-2
    assert jnp.allclose(predict, ref_pred, atol=ATOL, rtol=RTOL), \
        float(jnp.max(jnp.abs(predict - ref_pred)))
    assert jnp.allclose(hf_out, ref_hf, atol=ATOL, rtol=RTOL), \
        float(jnp.max(jnp.abs(hf_out - ref_hf)))
    assert jnp.allclose(hb_out, ref_hb, atol=ATOL, rtol=RTOL), \
        float(jnp.max(jnp.abs(hb_out - ref_hb)))

    print("KERNEL_OK")
</pallas_src>

<mosaic_0001>
module attributes {stable_mosaic.version = 11 : i64} {
  func.func @kernel(%arg0: i32, %arg1: memref<2x16x128xbf16, #tpu.memory_space<vmem>>, %arg2: memref<128x128xbf16, #tpu.memory_space<vmem>>, %arg3: memref<1x128xf32, #tpu.memory_space<vmem>>, %arg4: memref<128x128xbf16, #tpu.memory_space<vmem>>, %arg5: memref<1x128xf32, #tpu.memory_space<vmem>>, %arg6: memref<128x128xbf16, #tpu.memory_space<vmem>>, %arg7: memref<1x128xf32, #tpu.memory_space<vmem>>, %arg8: memref<128x128xbf16, #tpu.memory_space<vmem>>, %arg9: memref<1x128xf32, #tpu.memory_space<vmem>>, %arg10: memref<128x128xbf16, #tpu.memory_space<vmem>>, %arg11: memref<1x128xf32, #tpu.memory_space<vmem>>, %arg12: memref<128x128xbf16, #tpu.memory_space<vmem>>, %arg13: memref<1x128xf32, #tpu.memory_space<vmem>>, %arg14: memref<128x128xbf16, #tpu.memory_space<vmem>>, %arg15: memref<1x128xf32, #tpu.memory_space<vmem>>, %arg16: memref<128x128xbf16, #tpu.memory_space<vmem>>, %arg17: memref<1x128xf32, #tpu.memory_space<vmem>>, %arg18: memref<128x128xbf16, #tpu.memory_space<vmem>>, %arg19: memref<1x128xf32, #tpu.memory_space<vmem>>, %arg20: memref<128x128xbf16, #tpu.memory_space<vmem>>, %arg21: memref<1x128xf32, #tpu.memory_space<vmem>>, %arg22: memref<16x128xf32, #tpu.memory_space<vmem>>, %arg23: memref<16x128xf32, #tpu.memory_space<vmem>>) attributes {dimension_semantics = [#tpu.dimension_semantics<parallel>], iteration_bounds = array<i64: 2>, scalar_prefetch = 0 : i64, scratch_operands = 0 : i64, tpu.core_type = #tpu.core_type<tc>, window_params = [{transform_indices = @transform_0, window_bounds = array<i64: 2, 16, 128>}, {pipeline_mode = #tpu.pipeline_mode<synchronous>, transform_indices = @transform_1, window_bounds = array<i64: 128, 128>}, {pipeline_mode = #tpu.pipeline_mode<synchronous>, transform_indices = @transform_2, window_bounds = array<i64: 1, 128>}, {pipeline_mode = #tpu.pipeline_mode<synchronous>, transform_indices = @transform_3, window_bounds = array<i64: 128, 128>}, {pipeline_mode = #tpu.pipeline_mode<synchronous>, transform_indices = @transform_4, window_bounds = array<i64: 1, 128>}, {pipeline_mode = #tpu.pipeline_mode<synchronous>, transform_indices = @transform_5, window_bounds = array<i64: 128, 128>}, {pipeline_mode = #tpu.pipeline_mode<synchronous>, transform_indices = @transform_6, window_bounds = array<i64: 1, 128>}, {pipeline_mode = #tpu.pipeline_mode<synchronous>, transform_indices = @transform_7, window_bounds = array<i64: 128, 128>}, {pipeline_mode = #tpu.pipeline_mode<synchronous>, transform_indices = @transform_8, window_bounds = array<i64: 1, 128>}, {pipeline_mode = #tpu.pipeline_mode<synchronous>, transform_indices = @transform_9, window_bounds = array<i64: 128, 128>}, {pipeline_mode = #tpu.pipeline_mode<synchronous>, transform_indices = @transform_10, window_bounds = array<i64: 1, 128>}, {pipeline_mode = #tpu.pipeline_mode<synchronous>, transform_indices = @transform_11, window_bounds = array<i64: 128, 128>}, {pipeline_mode = #tpu.pipeline_mode<synchronous>, transform_indices = @transform_12, window_bounds = array<i64: 1, 128>}, {pipeline_mode = #tpu.pipeline_mode<synchronous>, transform_indices = @transform_13, window_bounds = array<i64: 128, 128>}, {pipeline_mode = #tpu.pipeline_mode<synchronous>, transform_indices = @transform_14, window_bounds = array<i64: 1, 128>}, {pipeline_mode = #tpu.pipeline_mode<synchronous>, transform_indices = @transform_15, window_bounds = array<i64: 128, 128>}, {pipeline_mode = #tpu.pipeline_mode<synchronous>, transform_indices = @transform_16, window_bounds = array<i64: 1, 128>}, {pipeline_mode = #tpu.pipeline_mode<synchronous>, transform_indices = @transform_17, window_bounds = array<i64: 128, 128>}, {pipeline_mode = #tpu.pipeline_mode<synchronous>, transform_indices = @transform_18, window_bounds = array<i64: 1, 128>}, {pipeline_mode = #tpu.pipeline_mode<synchronous>, transform_indices = @transform_19, window_bounds = array<i64: 128, 128>}, {pipeline_mode = #tpu.pipeline_mode<synchronous>, transform_indices = @transform_20, window_bounds = array<i64: 1, 128>}, {transform_indices = @transform_21, window_bounds = array<i64: 16, 128>}, {transform_indices = @transform_22, window_bounds = array<i64: 16, 128>}]} {
    %c0 = arith.constant 0 : index
    %c0_0 = arith.constant 0 : index
    %c0_1 = arith.constant 0 : index
    %0 = vector.load %arg1[%c0, %c0_0, %c0_1] : memref<2x16x128xbf16, #tpu.memory_space<vmem>>, vector<2x16x128xbf16>
    %1 = vector.shape_cast %0 : vector<2x16x128xbf16> to vector<32x128xbf16>
    %2 = arith.extf %1 : vector<32x128xbf16> to vector<32x128xf32>
    %c0_2 = arith.constant 0 : index
    %c0_3 = arith.constant 0 : index
    %3 = vector.load %arg2[%c0_2, %c0_3] : memref<128x128xbf16, #tpu.memory_space<vmem>>, vector<128x128xbf16>
    %cst = arith.constant dense<0.000000e+00> : vector<32x128xf32>
    %4 = tpu.matmul %1, %3, %cst {dimension_numbers = #tpu.dot_dimension_numbers<[1], [0], [0], [1], [0, 0, 1, 1], [], []>} : vector<32x128xbf16>, vector<128x128xbf16>, vector<32x128xf32> -> vector<32x128xf32>
    %c0_4 = arith.constant 0 : index
    %c0_5 = arith.constant 0 : index
    %5 = vector.load %arg3[%c0_4, %c0_5] : memref<1x128xf32, #tpu.memory_space<vmem>>, vector<1x128xf32>
    %6 = vector.broadcast %5 : vector<1x128xf32> to vector<32x128xf32>
    %7 = arith.addf %4, %6 : vector<32x128xf32>
    %cst_6 = arith.constant 0.000000e+00 : f32
    %8 = vector.broadcast %cst_6 : f32 to vector<32x128xf32>
    %9 = arith.maximumf %7, %8 : vector<32x128xf32>
    %10 = arith.truncf %9 : vector<32x128xf32> to vector<32x128xbf16>
    %c0_7 = arith.constant 0 : index
    %c0_8 = arith.constant 0 : index
    %11 = vector.load %arg4[%c0_7, %c0_8] : memref<128x128xbf16, #tpu.memory_space<vmem>>, vector<128x128xbf16>
    %cst_9 = arith.constant dense<0.000000e+00> : vector<32x128xf32>
    %12 = tpu.matmul %10, %11, %cst_9 {dimension_numbers = #tpu.dot_dimension_numbers<[1], [0], [0], [1], [0, 0, 1, 1], [], []>} : vector<32x128xbf16>, vector<128x128xbf16>, vector<32x128xf32> -> vector<32x128xf32>
    %c0_10 = arith.constant 0 : index
    %c0_11 = arith.constant 0 : index
    %13 = vector.load %arg5[%c0_10, %c0_11] : memref<1x128xf32, #tpu.memory_space<vmem>>, vector<1x128xf32>
    %14 = vector.broadcast %13 : vector<1x128xf32> to vector<32x128xf32>
    %15 = arith.addf %12, %14 : vector<32x128xf32>
    %16 = arith.addf %15, %2 : vector<32x128xf32>
    %17 = arith.truncf %16 : vector<32x128xf32> to vector<32x128xbf16>
    %c0_12 = arith.constant 0 : index
    %c0_13 = arith.constant 0 : index
    %18 = vector.load %arg6[%c0_12, %c0_13] : memref<128x128xbf16, #tpu.memory_space<vmem>>, vector<128x128xbf16>
    %cst_14 = arith.constant dense<0.000000e+00> : vector<32x128xf32>
    %19 = tpu.matmul %17, %18, %cst_14 {dimension_numbers = #tpu.dot_dimension_numbers<[1], [0], [0], [1], [0, 0, 1, 1], [], []>} : vector<32x128xbf16>, vector<128x128xbf16>, vector<32x128xf32> -> vector<32x128xf32>
    %c0_15 = arith.constant 0 : index
    %c0_16 = arith.constant 0 : index
    %20 = vector.load %arg7[%c0_15, %c0_16] : memref<1x128xf32, #tpu.memory_space<vmem>>, vector<1x128xf32>
    %21 = vector.broadcast %20 : vector<1x128xf32> to vector<32x128xf32>
    %22 = arith.addf %19, %21 : vector<32x128xf32>
    %cst_17 = arith.constant 0.000000e+00 : f32
    %23 = vector.broadcast %cst_17 : f32 to vector<32x128xf32>
    %24 = arith.maximumf %22, %23 : vector<32x128xf32>
    %25 = arith.truncf %24 : vector<32x128xf32> to vector<32x128xbf16>
    %c0_18 = arith.constant 0 : index
    %c0_19 = arith.constant 0 : index
    %26 = vector.load %arg8[%c0_18, %c0_19] : memref<128x128xbf16, #tpu.memory_space<vmem>>, vector<128x128xbf16>
    %cst_20 = arith.constant dense<0.000000e+00> : vector<32x128xf32>
    %27 = tpu.matmul %25, %26, %cst_20 {dimension_numbers = #tpu.dot_dimension_numbers<[1], [0], [0], [1], [0, 0, 1, 1], [], []>} : vector<32x128xbf16>, vector<128x128xbf16>, vector<32x128xf32> -> vector<32x128xf32>
    %c0_21 = arith.constant 0 : index
    %c0_22 = arith.constant 0 : index
    %28 = vector.load %arg9[%c0_21, %c0_22] : memref<1x128xf32, #tpu.memory_space<vmem>>, vector<1x128xf32>
    %29 = vector.broadcast %28 : vector<1x128xf32> to vector<32x128xf32>
    %30 = arith.addf %27, %29 : vector<32x128xf32>
    %31 = arith.addf %30, %16 : vector<32x128xf32>
    %32 = arith.truncf %31 : vector<32x128xf32> to vector<32x128xbf16>
    %c0_23 = arith.constant 0 : index
    %c0_24 = arith.constant 0 : index
    %33 = vector.load %arg10[%c0_23, %c0_24] : memref<128x128xbf16, #tpu.memory_space<vmem>>, vector<128x128xbf16>
    %cst_25 = arith.constant dense<0.000000e+00> : vector<32x128xf32>
    %34 = tpu.matmul %32, %33, %cst_25 {dimension_numbers = #tpu.dot_dimension_numbers<[1], [0], [0], [1], [0, 0, 1, 1], [], []>} : vector<32x128xbf16>, vector<128x128xbf16>, vector<32x128xf32> -> vector<32x128xf32>
    %c0_26 = arith.constant 0 : index
    %c0_27 = arith.constant 0 : index
    %35 = vector.load %arg11[%c0_26, %c0_27] : memref<1x128xf32, #tpu.memory_space<vmem>>, vector<1x128xf32>
    %36 = vector.broadcast %35 : vector<1x128xf32> to vector<32x128xf32>
    %37 = arith.addf %34, %36 : vector<32x128xf32>
    %38 = tpu.iota {dimensions = array<i32: 1>} : vector<16x128xi32>
    %c64_i32 = arith.constant 64 : i32
    %39 = vector.broadcast %c64_i32 : i32 to vector<16x128xi32>
    %40 = arith.cmpi slt, %38, %39 : vector<16x128xi32>
    %41 = vector.extract_strided_slice %37 {offsets = [0, 0], sizes = [16, 128], strides = [1, 1]} : vector<32x128xf32> to vector<16x128xf32>
    %42 = vector.extract_strided_slice %37 {offsets = [16, 0], sizes = [16, 128], strides = [1, 1]} : vector<32x128xf32> to vector<16x128xf32>
    %43 = arith.select %40, %41, %42 : vector<16x128xi1>, vector<16x128xf32>
    %c0_28 = arith.constant 0 : index
    %c0_29 = arith.constant 0 : index
    %44 = vector.load %arg22[%c0_28, %c0_29] : memref<16x128xf32, #tpu.memory_space<vmem>>, vector<16x128xf32>
    tpu.vector_store %arg22[%c0_28, %c0_29], %43 {strides = array<i32>} : memref<16x128xf32, #tpu.memory_space<vmem>>, vector<16x128xf32>,
    %45 = arith.truncf %43 : vector<16x128xf32> to vector<16x128xbf16>
    %c0_30 = arith.constant 0 : index
    %c0_31 = arith.constant 0 : index
    %46 = vector.load %arg12[%c0_30, %c0_31] : memref<128x128xbf16, #tpu.memory_space<vmem>>, vector<128x128xbf16>
    %cst_32 = arith.constant dense<0.000000e+00> : vector<16x128xf32>
    %47 = tpu.matmul %45, %46, %cst_32 {dimension_numbers = #tpu.dot_dimension_numbers<[1], [0], [0], [1], [0, 0, 1, 1], [], []>} : vector<16x128xbf16>, vector<128x128xbf16>, vector<16x128xf32> -> vector<16x128xf32>
    %c0_33 = arith.constant 0 : index
    %c0_34 = arith.constant 0 : index
    %48 = vector.load %arg13[%c0_33, %c0_34] : memref<1x128xf32, #tpu.memory_space<vmem>>, vector<1x128xf32>
    %49 = vector.broadcast %48 : vector<1x128xf32> to vector<16x128xf32>
    %50 = arith.addf %47, %49 : vector<16x128xf32>
    %cst_35 = arith.constant 0.000000e+00 : f32
    %51 = vector.broadcast %cst_35 : f32 to vector<16x128xf32>
    %52 = arith.maximumf %50, %51 : vector<16x128xf32>
    %53 = arith.truncf %52 : vector<16x128xf32> to vector<16x128xbf16>
    %c0_36 = arith.constant 0 : index
    %c0_37 = arith.constant 0 : index
    %54 = vector.load %arg14[%c0_36, %c0_37] : memref<128x128xbf16, #tpu.memory_space<vmem>>, vector<128x128xbf16>
    %cst_38 = arith.constant dense<0.000000e+00> : vector<16x128xf32>
    %55 = tpu.matmul %53, %54, %cst_38 {dimension_numbers = #tpu.dot_dimension_numbers<[1], [0], [0], [1], [0, 0, 1, 1], [], []>} : vector<16x128xbf16>, vector<128x128xbf16>, vector<16x128xf32> -> vector<16x128xf32>
    %c0_39 = arith.constant 0 : index
    %c0_40 = arith.constant 0 : index
    %56 = vector.load %arg15[%c0_39, %c0_40] : memref<1x128xf32, #tpu.memory_space<vmem>>, vector<1x128xf32>
    %57 = vector.broadcast %56 : vector<1x128xf32> to vector<16x128xf32>
    %58 = arith.addf %55, %57 : vector<16x128xf32>
    %59 = arith.addf %58, %43 : vector<16x128xf32>
    %60 = arith.truncf %59 : vector<16x128xf32> to vector<16x128xbf16>
    %c0_41 = arith.constant 0 : index
    %c0_42 = arith.constant 0 : index
    %61 = vector.load %arg16[%c0_41, %c0_42] : memref<128x128xbf16, #tpu.memory_space<vmem>>, vector<128x128xbf16>
    %cst_43 = arith.constant dense<0.000000e+00> : vector<16x128xf32>
    %62 = tpu.matmul %60, %61, %cst_43 {dimension_numbers = #tpu.dot_dimension_numbers<[1], [0], [0], [1], [0, 0, 1, 1], [], []>} : vector<16x128xbf16>, vector<128x128xbf16>, vector<16x128xf32> -> vector<16x128xf32>
    %c0_44 = arith.constant 0 : index
    %c0_45 = arith.constant 0 : index
    %63 = vector.load %arg17[%c0_44, %c0_45] : memref<1x128xf32, #tpu.memory_space<vmem>>, vector<1x128xf32>
    %64 = vector.broadcast %63 : vector<1x128xf32> to vector<16x128xf32>
    %65 = arith.addf %62, %64 : vector<16x128xf32>
    %cst_46 = arith.constant 0.000000e+00 : f32
    %66 = vector.broadcast %cst_46 : f32 to vector<16x128xf32>
    %67 = arith.maximumf %65, %66 : vector<16x128xf32>
    %68 = arith.truncf %67 : vector<16x128xf32> to vector<16x128xbf16>
    %c0_47 = arith.constant 0 : index
    %c0_48 = arith.constant 0 : index
    %69 = vector.load %arg18[%c0_47, %c0_48] : memref<128x128xbf16, #tpu.memory_space<vmem>>, vector<128x128xbf16>
    %cst_49 = arith.constant dense<0.000000e+00> : vector<16x128xf32>
    %70 = tpu.matmul %68, %69, %cst_49 {dimension_numbers = #tpu.dot_dimension_numbers<[1], [0], [0], [1], [0, 0, 1, 1], [], []>} : vector<16x128xbf16>, vector<128x128xbf16>, vector<16x128xf32> -> vector<16x128xf32>
    %c0_50 = arith.constant 0 : index
    %c0_51 = arith.constant 0 : index
    %71 = vector.load %arg19[%c0_50, %c0_51] : memref<1x128xf32, #tpu.memory_space<vmem>>, vector<1x128xf32>
    %72 = vector.broadcast %71 : vector<1x128xf32> to vector<16x128xf32>
    %73 = arith.addf %70, %72 : vector<16x128xf32>
    %74 = arith.addf %73, %59 : vector<16x128xf32>
    %75 = arith.truncf %74 : vector<16x128xf32> to vector<16x128xbf16>
    %c0_52 = arith.constant 0 : index
    %c0_53 = arith.constant 0 : index
    %76 = vector.load %arg20[%c0_52, %c0_53] : memref<128x128xbf16, #tpu.memory_space<vmem>>, vector<128x128xbf16>
    %cst_54 = arith.constant dense<0.000000e+00> : vector<16x128xf32>
    %77 = tpu.matmul %75, %76, %cst_54 {dimension_numbers = #tpu.dot_dimension_numbers<[1], [0], [0], [1], [0, 0, 1, 1], [], []>} : vector<16x128xbf16>, vector<128x128xbf16>, vector<16x128xf32> -> vector<16x128xf32>
    %c0_55 = arith.constant 0 : index
    %c0_56 = arith.constant 0 : index
    %78 = vector.load %arg21[%c0_55, %c0_56] : memref<1x128xf32, #tpu.memory_space<vmem>>, vector<1x128xf32>
    %79 = vector.broadcast %78 : vector<1x128xf32> to vector<16x128xf32>
    %80 = arith.addf %77, %79 : vector<16x128xf32>
    %c0_57 = arith.constant 0 : index
    %c0_58 = arith.constant 0 : index
    %81 = vector.load %arg23[%c0_57, %c0_58] : memref<16x128xf32, #tpu.memory_space<vmem>>, vector<16x128xf32>
    tpu.vector_store %arg23[%c0_57, %c0_58], %80 {strides = array<i32>} : memref<16x128xf32, #tpu.memory_space<vmem>>, vector<16x128xf32>,
    return
  }
  func.func @transform_0(%arg0: i32) -> (i32, i32, i32) {
    %c0_i32 = arith.constant 0 : i32
    %c0_i32_0 = arith.constant 0 : i32
    %c0_i32_1 = arith.constant 0 : i32
    return %c0_i32, %arg0, %c0_i32_0 : i32, i32, i32
  }
  func.func @transform_1(%arg0: i32) -> (i32, i32) {
    %c0_i32 = arith.constant 0 : i32
    %c0_i32_0 = arith.constant 0 : i32
    %c0_i32_1 = arith.constant 0 : i32
    return %c0_i32, %c0_i32_0 : i32, i32
  }
  func.func @transform_2(%arg0: i32) -> (i32, i32) {
    %c0_i32 = arith.constant 0 : i32
    %c0_i32_0 = arith.constant 0 : i32
    %c0_i32_1 = arith.constant 0 : i32
    return %c0_i32, %c0_i32_0 : i32, i32
  }
  func.func @transform_3(%arg0: i32) -> (i32, i32) {
    %c0_i32 = arith.constant 0 : i32
    %c0_i32_0 = arith.constant 0 : i32
    %c0_i32_1 = arith.constant 0 : i32
    return %c0_i32, %c0_i32_0 : i32, i32
  }
  func.func @transform_4(%arg0: i32) -> (i32, i32) {
    %c0_i32 = arith.constant 0 : i32
    %c0_i32_0 = arith.constant 0 : i32
    %c0_i32_1 = arith.constant 0 : i32
    return %c0_i32, %c0_i32_0 : i32, i32
  }
  func.func @transform_5(%arg0: i32) -> (i32, i32) {
    %c0_i32 = arith.constant 0 : i32
    %c0_i32_0 = arith.constant 0 : i32
    %c0_i32_1 = arith.constant 0 : i32
    return %c0_i32, %c0_i32_0 : i32, i32
  }
  func.func @transform_6(%arg0: i32) -> (i32, i32) {
    %c0_i32 = arith.constant 0 : i32
    %c0_i32_0 = arith.constant 0 : i32
    %c0_i32_1 = arith.constant 0 : i32
    return %c0_i32, %c0_i32_0 : i32, i32
  }
  func.func @transform_7(%arg0: i32) -> (i32, i32) {
    %c0_i32 = arith.constant 0 : i32
    %c0_i32_0 = arith.constant 0 : i32
    %c0_i32_1 = arith.constant 0 : i32
    return %c0_i32, %c0_i32_0 : i32, i32
  }
  func.func @transform_8(%arg0: i32) -> (i32, i32) {
    %c0_i32 = arith.constant 0 : i32
    %c0_i32_0 = arith.constant 0 : i32
    %c0_i32_1 = arith.constant 0 : i32
    return %c0_i32, %c0_i32_0 : i32, i32
  }
  func.func @transform_9(%arg0: i32) -> (i32, i32) {
    %c0_i32 = arith.constant 0 : i32
    %c0_i32_0 = arith.constant 0 : i32
    %c0_i32_1 = arith.constant 0 : i32
    return %c0_i32, %c0_i32_0 : i32, i32
  }
  func.func @transform_10(%arg0: i32) -> (i32, i32) {
    %c0_i32 = arith.constant 0 : i32
    %c0_i32_0 = arith.constant 0 : i32
    %c0_i32_1 = arith.constant 0 : i32
    return %c0_i32, %c0_i32_0 : i32, i32
  }
  func.func @transform_11(%arg0: i32) -> (i32, i32) {
    %c0_i32 = arith.constant 0 : i32
    %c0_i32_0 = arith.constant 0 : i32
    %c0_i32_1 = arith.constant 0 : i32
    return %c0_i32, %c0_i32_0 : i32, i32
  }
  func.func @transform_12(%arg0: i32) -> (i32, i32) {
    %c0_i32 = arith.constant 0 : i32
    %c0_i32_0 = arith.constant 0 : i32
    %c0_i32_1 = arith.constant 0 : i32
    return %c0_i32, %c0_i32_0 : i32, i32
  }
  func.func @transform_13(%arg0: i32) -> (i32, i32) {
    %c0_i32 = arith.constant 0 : i32
    %c0_i32_0 = arith.constant 0 : i32
    %c0_i32_1 = arith.constant 0 : i32
    return %c0_i32, %c0_i32_0 : i32, i32
  }
  func.func @transform_14(%arg0: i32) -> (i32, i32) {
    %c0_i32 = arith.constant 0 : i32
    %c0_i32_0 = arith.constant 0 : i32
    %c0_i32_1 = arith.constant 0 : i32
    return %c0_i32, %c0_i32_0 : i32, i32
  }
  func.func @transform_15(%arg0: i32) -> (i32, i32) {
    %c0_i32 = arith.constant 0 : i32
    %c0_i32_0 = arith.constant 0 : i32
    %c0_i32_1 = arith.constant 0 : i32
    return %c0_i32, %c0_i32_0 : i32, i32
  }
  func.func @transform_16(%arg0: i32) -> (i32, i32) {
    %c0_i32 = arith.constant 0 : i32
    %c0_i32_0 = arith.constant 0 : i32
    %c0_i32_1 = arith.constant 0 : i32
    return %c0_i32, %c0_i32_0 : i32, i32
  }
  func.func @transform_17(%arg0: i32) -> (i32, i32) {
    %c0_i32 = arith.constant 0 : i32
    %c0_i32_0 = arith.constant 0 : i32
    %c0_i32_1 = arith.constant 0 : i32
    return %c0_i32, %c0_i32_0 : i32, i32
  }
  func.func @transform_18(%arg0: i32) -> (i32, i32) {
    %c0_i32 = arith.constant 0 : i32
    %c0_i32_0 = arith.constant 0 : i32
    %c0_i32_1 = arith.constant 0 : i32
    return %c0_i32, %c0_i32_0 : i32, i32
  }
  func.func @transform_19(%arg0: i32) -> (i32, i32) {
    %c0_i32 = arith.constant 0 : i32
    %c0_i32_0 = arith.constant 0 : i32
    %c0_i32_1 = arith.constant 0 : i32
    return %c0_i32, %c0_i32_0 : i32, i32
  }
  func.func @transform_20(%arg0: i32) -> (i32, i32) {
    %c0_i32 = arith.constant 0 : i32
    %c0_i32_0 = arith.constant 0 : i32
    %c0_i32_1 = arith.constant 0 : i32
    return %c0_i32, %c0_i32_0 : i32, i32
  }
  func.func @transform_21(%arg0: i32) -> (i32, i32) {
    %c0_i32 = arith.constant 0 : i32
    %c0_i32_0 = arith.constant 0 : i32
    return %arg0, %c0_i32 : i32, i32
  }
  func.func @transform_22(%arg0: i32) -> (i32, i32) {
    %c0_i32 = arith.constant 0 : i32
    %c0_i32_0 = arith.constant 0 : i32
    return %arg0, %c0_i32 : i32, i32
  }
}

</mosaic_0001>

<llo_original>
// kernel: tpu_custom_call.1
$region0: #{tpu_custom_call.1}
  #allocation0 [shape = 'u32[]', space=smem, size = 0x4, offset = 0x4, fixed_abs, tag = 'smem constant byte address 0x4 - core index']
  #allocation1 [shape = 'u32[144,128]{1,0:T(1,128)}', space=vmem, size = 0x12000, scoped, tag = 'internal scratch']
  #allocation34 [shape = 's32[]', space=sflag, size = 0x4, offset = 0, fixed_abs, tag = 'sflag constant byte address 0x0 - dummy sync flag']
  %s0 = inlined_call_operand.hbm [shape: bf16[2,32,128], index: 0, kind: input, shape index: {}]
  %s1 = inlined_call_operand.hbm [shape: bf16[128,128], index: 1, kind: input, shape index: {}]
  %s2 = inlined_call_operand.hbm [shape: f32[1,128], index: 2, kind: input, shape index: {}]
  %s3 = inlined_call_operand.hbm [shape: bf16[128,128], index: 3, kind: input, shape index: {}]
  %s4 = inlined_call_operand.hbm [shape: f32[1,128], index: 4, kind: input, shape index: {}]
  %s5 = inlined_call_operand.hbm [shape: bf16[128,128], index: 5, kind: input, shape index: {}]
  %s6 = inlined_call_operand.hbm [shape: f32[1,128], index: 6, kind: input, shape index: {}]
  %s7 = inlined_call_operand.hbm [shape: bf16[128,128], index: 7, kind: input, shape index: {}]
  %s8 = inlined_call_operand.hbm [shape: f32[1,128], index: 8, kind: input, shape index: {}]
  %s9 = inlined_call_operand.hbm [shape: bf16[128,128], index: 9, kind: input, shape index: {}]
  %s10 = inlined_call_operand.hbm [shape: f32[1,128], index: 10, kind: input, shape index: {}]
  %s11 = inlined_call_operand.hbm [shape: bf16[128,128], index: 11, kind: input, shape index: {}]
  %s12 = inlined_call_operand.hbm [shape: f32[1,128], index: 12, kind: input, shape index: {}]
  %s13 = inlined_call_operand.hbm [shape: bf16[128,128], index: 13, kind: input, shape index: {}]
  %s14 = inlined_call_operand.hbm [shape: f32[1,128], index: 14, kind: input, shape index: {}]
  %s15 = inlined_call_operand.hbm [shape: bf16[128,128], index: 15, kind: input, shape index: {}]
  %s16 = inlined_call_operand.hbm [shape: f32[1,128], index: 16, kind: input, shape index: {}]
  %s17 = inlined_call_operand.vmem [shape: bf16[128,128], index: 17, kind: input, shape index: {}]
  %s18 = inlined_call_operand.vmem [shape: f32[1,128], index: 18, kind: input, shape index: {}]
  %s19 = inlined_call_operand.hbm [shape: bf16[128,128], index: 19, kind: input, shape index: {}]
  %s20 = inlined_call_operand.vmem [shape: f32[1,128], index: 20, kind: input, shape index: {}]
  %s21 = inlined_call_operand.hbm [shape: f32[32,128], index: 21, kind: output, shape index: {0}]
  %s22 = inlined_call_operand.hbm [shape: f32[32,128], index: 22, kind: output, shape index: {1}]
  %23 = xla_tuple %s21, %s22
  %s24 = sld [smem:[#allocation0]]
  $region197: #{tpu_custom_call.1} parent=0
    _
  %s26 = ssub.s32 1, %s24
  %s27 = scalar_select 0, %s26, %s24
  $region1: #{tpu_custom_call.1} parent=0
    #allocation2 [shape = 'u8[16384]{0}', space=vmem, size = 0x4000, scoped, tag = 'input window, operand 0']
    #allocation3 [shape = 's32[2]{0}', space=sflag, size = 0x8, scoped, tag = 'scoped memory for tpu_custom_call.1']
    #allocation4 [shape = 's32[2]{0}', space=sflag, size = 0x8, scoped, tag = 'scoped memory for tpu_custom_call.1']
    #allocation5 [shape = 'u8[32768]{0}', space=vmem, size = 0x8000, scoped, tag = 'input window, operand 1, single buffered']
    #allocation6 [shape = 's32[1]{0}', space=sflag, size = 0x4, scoped, tag = 'scoped memory for tpu_custom_call.1']
    #allocation7 [shape = 'u8[512]{0}', space=vmem, size = 0x400, scoped, tag = 'input window, operand 2, single buffered']
    #allocation8 [shape = 'u8[32768]{0}', space=vmem, size = 0x8000, scoped, tag = 'input window, operand 3, single buffered']
    #allocation9 [shape = 's32[1]{0}', space=sflag, size = 0x4, scoped, tag = 'scoped memory for tpu_custom_call.1']
    #allocation10 [shape = 'u8[512]{0}', space=vmem, size = 0x400, scoped, tag = 'input window, operand 4, single buffered']
    #allocation11 [shape = 'u8[32768]{0}', space=vmem, size = 0x8000, scoped, tag = 'input window, operand 5, single buffered']
    #allocation12 [shape = 's32[1]{0}', space=sflag, size = 0x4, scoped, tag = 'scoped memory for tpu_custom_call.1']
    #allocation13 [shape = 'u8[512]{0}', space=vmem, size = 0x400, scoped, tag = 'input window, operand 6, single buffered']
    #allocation14 [shape = 'u8[32768]{0}', space=vmem, size = 0x8000, scoped, tag = 'input window, operand 7, single buffered']
    #allocation15 [shape = 's32[1]{0}', space=sflag, size = 0x4, scoped, tag = 'scoped memory for tpu_custom_call.1']
    #allocation16 [shape = 'u8[512]{0}', space=vmem, size = 0x400, scoped, tag = 'input window, operand 8, single buffered']
    #allocation17 [shape = 'u8[32768]{0}', space=vmem, size = 0x8000, scoped, tag = 'input window, operand 9, single buffered']
    #allocation18 [shape = 's32[1]{0}', space=sflag, size = 0x4, scoped, tag = 'scoped memory for tpu_custom_call.1']
    #allocation19 [shape = 'u8[512]{0}', space=vmem, size = 0x400, scoped, tag = 'input window, operand 10, single buffered']
    #allocation20 [shape = 'u8[32768]{0}', space=vmem, size = 0x8000, scoped, tag = 'input window, operand 11, single buffered']
    #allocation21 [shape = 's32[1]{0}', space=sflag, size = 0x4, scoped, tag = 'scoped memory for tpu_custom_call.1']
    #allocation22 [shape = 'u8[512]{0}', space=vmem, size = 0x400, scoped, tag = 'input window, operand 12, single buffered']
    #allocation23 [shape = 'u8[32768]{0}', space=vmem, size = 0x8000, scoped, tag = 'input window, operand 13, single buffered']
    #allocation24 [shape = 's32[1]{0}', space=sflag, size = 0x4, scoped, tag = 'scoped memory for tpu_custom_call.1']
    #allocation25 [shape = 'u8[512]{0}', space=vmem, size = 0x400, scoped, tag = 'input window, operand 14, single buffered']
    #allocation26 [shape = 'u8[32768]{0}', space=vmem, size = 0x8000, scoped, tag = 'input window, operand 15, single buffered']
    #allocation27 [shape = 's32[1]{0}', space=sflag, size = 0x4, scoped, tag = 'scoped memory for tpu_custom_call.1']
    #allocation28 [shape = 'u8[512]{0}', space=vmem, size = 0x400, scoped, tag = 'input window, operand 16, single buffered']
    #allocation29 [shape = 'u8[32768]{0}', space=vmem, size = 0x8000, scoped, tag = 'input window, operand 19, single buffered']
    #allocation30 [shape = 's32[1]{0}', space=sflag, size = 0x4, scoped, tag = 'scoped memory for tpu_custom_call.1']
    #allocation31 [shape = 'u8[16384]{0}', space=vmem, size = 0x4000, scoped, tag = 'output window, operand 0']
    #allocation32 [shape = 'u8[16384]{0}', space=vmem, size = 0x4000, scoped, tag = 'output window, operand 1']
    #allocation33 [shape = 's32[2]{0}', space=sflag, size = 0x8, scoped, tag = 'scoped memory for tpu_custom_call.1']
    %28 = vsyncpa [#allocation3], 0
    %s29 = scalar_lea.sflag [#allocation3], 1
    %30 = vsyncpa %s29, 0
    %31 = vsyncpa [#allocation6], 0
    %32 = vsyncpa [#allocation9], 0
    %33 = vsyncpa [#allocation12], 0
    %34 = vsyncpa [#allocation15], 0
    %35 = vsyncpa [#allocation18], 0
    %36 = vsyncpa [#allocation21], 0
    %37 = vsyncpa [#allocation24], 0
    %38 = vsyncpa [#allocation27], 0
    %39 = vsyncpa [#allocation30], 0
    %40 = vsyncpa [#allocation4], 0
    %s41 = scalar_lea.sflag [#allocation4], 1
    %42 = vsyncpa %s41, 0
    %43 = vsyncpa [#allocation33], 0
    %s44 = scalar_lea.sflag [#allocation33], 1
    %45 = vsyncpa %s44, 0
    loop: start=0, step=1, limit=4
    $region2: #{tpu_custom_call.1} parent=1 // loop_pre_header
      _
    $region3: #{tpu_custom_call.1} parent=1 // loop_header
      %s47 = sphi 0, %s51
      %p48 = scmp.ge.s32.totalorder %s47, 4
      %s57 = sphi 0, %s59
      %s60 = sphi 0, %s57
      %s61 = sphi 0, %s60
      %s77 = sphi 0, %s61
      %s81 = sphi 0, %s81
      %s83 = sphi 0, %s81
      %s84 = sphi 0, %s83
      %s98 = sphi 0, %s84
      %s102 = sphi 0, %s102
      %s104 = sphi 0, %s102
      %s105 = sphi 0, %s104
      %s119 = sphi 0, %s105
      %s123 = sphi 0, %s123
      %s125 = sphi 0, %s123
      %s126 = sphi 0, %s125
      %s140 = sphi 0, %s126
      %s144 = sphi 0, %s144
      %s146 = sphi 0, %s144
      %s147 = sphi 0, %s146
      %s161 = sphi 0, %s147
      %s165 = sphi 0, %s165
      %s167 = sphi 0, %s165
      %s168 = sphi 0, %s167
      %s182 = sphi 0, %s168
      %s186 = sphi 0, %s186
      %s188 = sphi 0, %s186
      %s189 = sphi 0, %s188
      %s203 = sphi 0, %s189
      %s207 = sphi 0, %s207
      %s209 = sphi 0, %s207
      %s210 = sphi 0, %s209
      %s224 = sphi 0, %s210
      %s228 = sphi 0, %s228
      %s230 = sphi 0, %s228
      %s231 = sphi 0, %s230
      %s245 = sphi 0, %s231
      %s249 = sphi 0, %s249
      %s251 = sphi 0, %s249
      %s252 = sphi 0, %s251
      %s266 = sphi 0, %s252
      %s270 = sphi 0, %s270
      %s272 = sphi 0, %s270
      %s273 = sphi 0, %s272
      %s287 = sphi 0, %s273
      %s291 = sphi 0, %s291
      %s293 = sphi 0, %s291
      %s294 = sphi 0, %s293
      %s308 = sphi 0, %s294
      %s312 = sphi 0, %s312
      %s314 = sphi 0, %s312
      %s315 = sphi 0, %s314
      %s329 = sphi 0, %s315
      %s333 = sphi 0, %s333
      %s335 = sphi 0, %s333
      %s336 = sphi 0, %s335
      %s350 = sphi 0, %s336
      %s354 = sphi 0, %s354
      %s356 = sphi 0, %s354
      %s357 = sphi 0, %s356
      %s371 = sphi 0, %s357
      %s375 = sphi 0, %s375
      %s377 = sphi 0, %s375
      %s378 = sphi 0, %s377
      %s392 = sphi 0, %s378
      %s396 = sphi 0, %s396
      %s398 = sphi 0, %s396
      %s399 = sphi 0, %s398
      %s413 = sphi 0, %s399
      %s417 = sphi 0, %s417
      %s419 = sphi 0, %s417
      %s420 = sphi 0, %s419
      %s434 = sphi 0, %s420
      %s438 = sphi 0, %s438
      %s440 = sphi 0, %s438
      %s441 = sphi 0, %s440
      %s455 = sphi 0, %s441
      %s459 = sphi 0, %s459
      %s461 = sphi 0, %s459
      %s462 = sphi 0, %s461
      %s476 = sphi 0, %s462
      %s480 = sphi 0, %s480
      %s482 = sphi 0, %s480
      %s483 = sphi 0, %s482
      %s497 = sphi 0, %s483
      %s503 = sphi 0, %s505
      %s506 = sphi 0, %s503
      %s507 = sphi 0, %s506
      %s523 = sphi 0, %s507
      %s529 = sphi 0, %s531
      %s532 = sphi 0, %s529
      %s533 = sphi 0, %s532
      %s549 = sphi 0, %s533
    $region4: #{tpu_custom_call.1} parent=1 // loop_header_branch
      %50 = sbr.rel (%p48) target = $region8
    $region5: #{tpu_custom_call.1} parent=1 // loop_body
      %s52 = ssub.s32 %s47, 1
      %s53 = ssub.s32 %s47, 2
      %s54 = sadd.s32 %s47, 1
      %s55 = ssub.s32 %s47, %s54
      %p56 = scmp.eq.s32.totalorder %s55, 0
      %s58 = sadd.s32 %s57, 1
      %s59 = scalar_select %p56, %s57, %s58
      %p62 = pneg %p56
      %p63 = scmp.eq.s32.totalorder %s47, 1
      %p64 = por %p62, %p63
      %p65 = scmp.ne.s32.totalorder %s57, %s60
      %p66 = scmp.eq.s32.totalorder %s47, 0
      %p67 = por %p65, %p66
      %p68 = scmp.ne.s32.totalorder %s57, %s60
      %p69 = scmp.eq.s32.totalorder %s52, 1
      %p70 = por %p68, %p69
      %p71 = scmp.ne.s32.totalorder %s60, %s61
      %p72 = scmp.eq.s32.totalorder %s52, 0
      %p73 = por %p71, %p72
      %p74 = scmp.ne.s32.totalorder %s60, %s61
      %p75 = scmp.eq.s32.totalorder %s53, 1
      %p76 = por %p74, %p75
      %p78 = scmp.ne.s32.totalorder %s61, %s77
      %p79 = scmp.eq.s32.totalorder %s53, 0
      %p80 = por %p78, %p79
      %s82 = sadd.s32 %s81, 1
      %p85 = scmp.eq.s32.totalorder %s47, 1
      %p86 = scmp.ne.s32.totalorder %s81, %s83
      %p87 = scmp.eq.s32.totalorder %s47, 0
      %p88 = por %p86, %p87
      %p89 = scmp.ne.s32.totalorder %s81, %s83
      %p90 = scmp.eq.s32.totalorder %s52, 1
      %p91 = por %p89, %p90
      %p92 = scmp.ne.s32.totalorder %s83, %s84
      %p93 = scmp.eq.s32.totalorder %s52, 0
      %p94 = por %p92, %p93
      %p95 = scmp.ne.s32.totalorder %s83, %s84
      %p96 = scmp.eq.s32.totalorder %s53, 1
      %p97 = por %p95, %p96
      %p99 = scmp.ne.s32.totalorder %s84, %s98
      %p100 = scmp.eq.s32.totalorder %s53, 0
      %p101 = por %p99, %p100
      %s103 = sadd.s32 %s102, 1
      %p106 = scmp.eq.s32.totalorder %s47, 1
      %p107 = scmp.ne.s32.totalorder %s102, %s104
      %p108 = scmp.eq.s32.totalorder %s47, 0
      %p109 = por %p107, %p108
      %p110 = scmp.ne.s32.totalorder %s102, %s104
      %p111 = scmp.eq.s32.totalorder %s52, 1
      %p112 = por %p110, %p111
      %p113 = scmp.ne.s32.totalorder %s104, %s105
      %p114 = scmp.eq.s32.totalorder %s52, 0
      %p115 = por %p113, %p114
      %p116 = scmp.ne.s32.totalorder %s104, %s105
      %p117 = scmp.eq.s32.totalorder %s53, 1
      %p118 = por %p116, %p117
      %p120 = scmp.ne.s32.totalorder %s105, %s119
      %p121 = scmp.eq.s32.totalorder %s53, 0
      %p122 = por %p120, %p121
      %s124 = sadd.s32 %s123, 1
      %p127 = scmp.eq.s32.totalorder %s47, 1
      %p128 = scmp.ne.s32.totalorder %s123, %s125
      %p129 = scmp.eq.s32.totalorder %s47, 0
      %p130 = por %p128, %p129
      %p131 = scmp.ne.s32.totalorder %s123, %s125
      %p132 = scmp.eq.s32.totalorder %s52, 1
      %p133 = por %p131, %p132
      %p134 = scmp.ne.s32.totalorder %s125, %s126
      %p135 = scmp.eq.s32.totalorder %s52, 0
      %p136 = por %p134, %p135
      %p137 = scmp.ne.s32.totalorder %s125, %s126
      %p138 = scmp.eq.s32.totalorder %s53, 1
      %p139 = por %p137, %p138
      %p141 = scmp.ne.s32.totalorder %s126, %s140
      %p142 = scmp.eq.s32.totalorder %s53, 0
      %p143 = por %p141, %p142
      %s145 = sadd.s32 %s144, 1
      %p148 = scmp.eq.s32.totalorder %s47, 1
      %p149 = scmp.ne.s32.totalorder %s144, %s146
      %p150 = scmp.eq.s32.totalorder %s47, 0
      %p151 = por %p149, %p150
      %p152 = scmp.ne.s32.totalorder %s144, %s146
      %p153 = scmp.eq.s32.totalorder %s52, 1
      %p154 = por %p152, %p153
      %p155 = scmp.ne.s32.totalorder %s146, %s147
      %p156 = scmp.eq.s32.totalorder %s52, 0
      %p157 = por %p155, %p156
      %p158 = scmp.ne.s32.totalorder %s146, %s147
      %p159 = scmp.eq.s32.totalorder %s53, 1
      %p160 = por %p158, %p159
      %p162 = scmp.ne.s32.totalorder %s147, %s161
      %p163 = scmp.eq.s32.totalorder %s53, 0
      %p164 = por %p162, %p163
      %s166 = sadd.s32 %s165, 1
      %p169 = scmp.eq.s32.totalorder %s47, 1
      %p170 = scmp.ne.s32.totalorder %s165, %s167
      %p171 = scmp.eq.s32.totalorder %s47, 0
      %p172 = por %p170, %p171
      %p173 = scmp.ne.s32.totalorder %s165, %s167
      %p174 = scmp.eq.s32.totalorder %s52, 1
      %p175 = por %p173, %p174
      %p176 = scmp.ne.s32.totalorder %s167, %s168
      %p177 = scmp.eq.s32.totalorder %s52, 0
      %p178 = por %p176, %p177
      %p179 = scmp.ne.s32.totalorder %s167, %s168
      %p180 = scmp.eq.s32.totalorder %s53, 1
      %p181 = por %p179, %p180
      %p183 = scmp.ne.s32.totalorder %s168, %s182
      %p184 = scmp.eq.s32.totalorder %s53, 0
      %p185 = por %p183, %p184
      %s187 = sadd.s32 %s186, 1
      %p190 = scmp.eq.s32.totalorder %s47, 1
      %p191 = scmp.ne.s32.totalorder %s186, %s188
      %p192 = scmp.eq.s32.totalorder %s47, 0
      %p193 = por %p191, %p192
      %p194 = scmp.ne.s32.totalorder %s186, %s188
      %p195 = scmp.eq.s32.totalorder %s52, 1
      %p196 = por %p194, %p195
      %p197 = scmp.ne.s32.totalorder %s188, %s189
      %p198 = scmp.eq.s32.totalorder %s52, 0
      %p199 = por %p197, %p198
      %p200 = scmp.ne.s32.totalorder %s188, %s189
      %p201 = scmp.eq.s32.totalorder %s53, 1
      %p202 = por %p200, %p201
      %p204 = scmp.ne.s32.totalorder %s189, %s203
      %p205 = scmp.eq.s32.totalorder %s53, 0
      %p206 = por %p204, %p205
      %s208 = sadd.s32 %s207, 1
      %p211 = scmp.eq.s32.totalorder %s47, 1
      %p212 = scmp.ne.s32.totalorder %s207, %s209
      %p213 = scmp.eq.s32.totalorder %s47, 0
      %p214 = por %p212, %p213
      %p215 = scmp.ne.s32.totalorder %s207, %s209
      %p216 = scmp.eq.s32.totalorder %s52, 1
      %p217 = por %p215, %p216
      %p218 = scmp.ne.s32.totalorder %s209, %s210
      %p219 = scmp.eq.s32.totalorder %s52, 0
      %p220 = por %p218, %p219
      %p221 = scmp.ne.s32.totalorder %s209, %s210
      %p222 = scmp.eq.s32.totalorder %s53, 1
      %p223 = por %p221, %p222
      %p225 = scmp.ne.s32.totalorder %s210, %s224
      %p226 = scmp.eq.s32.totalorder %s53, 0
      %p227 = por %p225, %p226
      %s229 = sadd.s32 %s228, 1
      %p232 = scmp.eq.s32.totalorder %s47, 1
      %p233 = scmp.ne.s32.totalorder %s228, %s230
      %p234 = scmp.eq.s32.totalorder %s47, 0
      %p235 = por %p233, %p234
      %p236 = scmp.ne.s32.totalorder %s228, %s230
      %p237 = scmp.eq.s32.totalorder %s52, 1
      %p238 = por %p236, %p237
      %p239 = scmp.ne.s32.totalorder %s230, %s231
      %p240 = scmp.eq.s32.totalorder %s52, 0
      %p241 = por %p239, %p240
      %p242 = scmp.ne.s32.totalorder %s230, %s231
      %p243 = scmp.eq.s32.totalorder %s53, 1
      %p244 = por %p242, %p243
      %p246 = scmp.ne.s32.totalorder %s231, %s245
      %p247 = scmp.eq.s32.totalorder %s53, 0
      %p248 = por %p246, %p247
      %s250 = sadd.s32 %s249, 1
      %p253 = scmp.eq.s32.totalorder %s47, 1
      %p254 = scmp.ne.s32.totalorder %s249, %s251
      %p255 = scmp.eq.s32.totalorder %s47, 0
      %p256 = por %p254, %p255
      %p257 = scmp.ne.s32.totalorder %s249, %s251
      %p258 = scmp.eq.s32.totalorder %s52, 1
      %p259 = por %p257, %p258
      %p260 = scmp.ne.s32.totalorder %s251, %s252
      %p261 = scmp.eq.s32.totalorder %s52, 0
      %p262 = por %p260, %p261
      %p263 = scmp.ne.s32.totalorder %s251, %s252
      %p264 = scmp.eq.s32.totalorder %s53, 1
      %p265 = por %p263, %p264
      %p267 = scmp.ne.s32.totalorder %s252, %s266
      %p268 = scmp.eq.s32.totalorder %s53, 0
      %p269 = por %p267, %p268
      %s271 = sadd.s32 %s270, 1
      %p274 = scmp.eq.s32.totalorder %s47, 1
      %p275 = scmp.ne.s32.totalorder %s270, %s272
      %p276 = scmp.eq.s32.totalorder %s47, 0
      %p277 = por %p275, %p276
      %p278 = scmp.ne.s32.totalorder %s270, %s272
      %p279 = scmp.eq.s32.totalorder %s52, 1
      %p280 = por %p278, %p279
      %p281 = scmp.ne.s32.totalorder %s272, %s273
      %p282 = scmp.eq.s32.totalorder %s52, 0
      %p283 = por %p281, %p282
      %p284 = scmp.ne.s32.totalorder %s272, %s273
      %p285 = scmp.eq.s32.totalorder %s53, 1
      %p286 = por %p284, %p285
      %p288 = scmp.ne.s32.totalorder %s273, %s287
      %p289 = scmp.eq.s32.totalorder %s53, 0
      %p290 = por %p288, %p289
      %s292 = sadd.s32 %s291, 1
      %p295 = scmp.eq.s32.totalorder %s47, 1
      %p296 = scmp.ne.s32.totalorder %s291, %s293
      %p297 = scmp.eq.s32.totalorder %s47, 0
      %p298 = por %p296, %p297
      %p299 = scmp.ne.s32.totalorder %s291, %s293
      %p300 = scmp.eq.s32.totalorder %s52, 1
      %p301 = por %p299, %p300
      %p302 = scmp.ne.s32.totalorder %s293, %s294
      %p303 = scmp.eq.s32.totalorder %s52, 0
      %p304 = por %p302, %p303
      %p305 = scmp.ne.s32.totalorder %s293, %s294
      %p306 = scmp.eq.s32.totalorder %s53, 1
      %p307 = por %p305, %p306
      %p309 = scmp.ne.s32.totalorder %s294, %s308
      %p310 = scmp.eq.s32.totalorder %s53, 0
      %p311 = por %p309, %p310
      %s313 = sadd.s32 %s312, 1
      %p316 = scmp.eq.s32.totalorder %s47, 1
      %p317 = scmp.ne.s32.totalorder %s312, %s314
      %p318 = scmp.eq.s32.totalorder %s47, 0
      %p319 = por %p317, %p318
      %p320 = scmp.ne.s32.totalorder %s312, %s314
      %p321 = scmp.eq.s32.totalorder %s52, 1
      %p322 = por %p320, %p321
      %p323 = scmp.ne.s32.totalorder %s314, %s315
      %p324 = scmp.eq.s32.totalorder %s52, 0
      %p325 = por %p323, %p324
      %p326 = scmp.ne.s32.totalorder %s314, %s315
      %p327 = scmp.eq.s32.totalorder %s53, 1
      %p328 = por %p326, %p327
      %p330 = scmp.ne.s32.totalorder %s315, %s329
      %p331 = scmp.eq.s32.totalorder %s53, 0
      %p332 = por %p330, %p331
      %s334 = sadd.s32 %s333, 1
      %p337 = scmp.eq.s32.totalorder %s47, 1
      %p338 = scmp.ne.s32.totalorder %s333, %s335
      %p339 = scmp.eq.s32.totalorder %s47, 0
      %p340 = por %p338, %p339
      %p341 = scmp.ne.s32.totalorder %s333, %s335
      %p342 = scmp.eq.s32.totalorder %s52, 1
      %p343 = por %p341, %p342
      %p344 = scmp.ne.s32.totalorder %s335, %s336
      %p345 = scmp.eq.s32.totalorder %s52, 0
      %p346 = por %p344, %p345
      %p347 = scmp.ne.s32.totalorder %s335, %s336
      %p348 = scmp.eq.s32.totalorder %s53, 1
      %p349 = por %p347, %p348
      %p351 = scmp.ne.s32.totalorder %s336, %s350
      %p352 = scmp.eq.s32.totalorder %s53, 0
      %p353 = por %p351, %p352
      %s355 = sadd.s32 %s354, 1
      %p358 = scmp.eq.s32.totalorder %s47, 1
      %p359 = scmp.ne.s32.totalorder %s354, %s356
      %p360 = scmp.eq.s32.totalorder %s47, 0
      %p361 = por %p359, %p360
      %p362 = scmp.ne.s32.totalorder %s354, %s356
      %p363 = scmp.eq.s32.totalorder %s52, 1
      %p364 = por %p362, %p363
      %p365 = scmp.ne.s32.totalorder %s356, %s357
      %p366 = scmp.eq.s32.totalorder %s52, 0
      %p367 = por %p365, %p366
      %p368 = scmp.ne.s32.totalorder %s356, %s357
      %p369 = scmp.eq.s32.totalorder %s53, 1
      %p370 = por %p368, %p369
      %p372 = scmp.ne.s32.totalorder %s357, %s371
      %p373 = scmp.eq.s32.totalorder %s53, 0
      %p374 = por %p372, %p373
      %s376 = sadd.s32 %s375, 1
      %p379 = scmp.eq.s32.totalorder %s47, 1
      %p380 = scmp.ne.s32.totalorder %s375, %s377
      %p381 = scmp.eq.s32.totalorder %s47, 0
      %p382 = por %p380, %p381
      %p383 = scmp.ne.s32.totalorder %s375, %s377
      %p384 = scmp.eq.s32.totalorder %s52, 1
      %p385 = por %p383, %p384
      %p386 = scmp.ne.s32.totalorder %s377, %s378
      %p387 = scmp.eq.s32.totalorder %s52, 0
      %p388 = por %p386, %p387
      %p389 = scmp.ne.s32.totalorder %s377, %s378
      %p390 = scmp.eq.s32.totalorder %s53, 1
      %p391 = por %p389, %p390
      %p393 = scmp.ne.s32.totalorder %s378, %s392
      %p394 = scmp.eq.s32.totalorder %s53, 0
      %p395 = por %p393, %p394
      %s397 = sadd.s32 %s396, 1
      %p400 = scmp.eq.s32.totalorder %s47, 1
      %p401 = scmp.ne.s32.totalorder %s396, %s398
      %p402 = scmp.eq.s32.totalorder %s47, 0
      %p403 = por %p401, %p402
      %p404 = scmp.ne.s32.totalorder %s396, %s398
      %p405 = scmp.eq.s32.totalorder %s52, 1
      %p406 = por %p404, %p405
      %p407 = scmp.ne.s32.totalorder %s398, %s399
      %p408 = scmp.eq.s32.totalorder %s52, 0
      %p409 = por %p407, %p408
      %p410 = scmp.ne.s32.totalorder %s398, %s399
      %p411 = scmp.eq.s32.totalorder %s53, 1
      %p412 = por %p410, %p411
      %p414 = scmp.ne.s32.totalorder %s399, %s413
      %p415 = scmp.eq.s32.totalorder %s53, 0
      %p416 = por %p414, %p415
      %s418 = sadd.s32 %s417, 1
      %p421 = scmp.eq.s32.totalorder %s47, 1
      %p422 = scmp.ne.s32.totalorder %s417, %s419
      %p423 = scmp.eq.s32.totalorder %s47, 0
      %p424 = por %p422, %p423
      %p425 = scmp.ne.s32.totalorder %s417, %s419
      %p426 = scmp.eq.s32.totalorder %s52, 1
      %p427 = por %p425, %p426
      %p428 = scmp.ne.s32.totalorder %s419, %s420
      %p429 = scmp.eq.s32.totalorder %s52, 0
      %p430 = por %p428, %p429
      %p431 = scmp.ne.s32.totalorder %s419, %s420
      %p432 = scmp.eq.s32.totalorder %s53, 1
      %p433 = por %p431, %p432
      %p435 = scmp.ne.s32.totalorder %s420, %s434
      %p436 = scmp.eq.s32.totalorder %s53, 0
      %p437 = por %p435, %p436
      %s439 = sadd.s32 %s438, 1
      %p442 = scmp.eq.s32.totalorder %s47, 1
      %p443 = scmp.ne.s32.totalorder %s438, %s440
      %p444 = scmp.eq.s32.totalorder %s47, 0
      %p445 = por %p443, %p444
      %p446 = scmp.ne.s32.totalorder %s438, %s440
      %p447 = scmp.eq.s32.totalorder %s52, 1
      %p448 = por %p446, %p447
      %p449 = scmp.ne.s32.totalorder %s440, %s441
      %p450 = scmp.eq.s32.totalorder %s52, 0
      %p451 = por %p449, %p450
      %p452 = scmp.ne.s32.totalorder %s440, %s441
      %p453 = scmp.eq.s32.totalorder %s53, 1
      %p454 = por %p452, %p453
      %p456 = scmp.ne.s32.totalorder %s441, %s455
      %p457 = scmp.eq.s32.totalorder %s53, 0
      %p458 = por %p456, %p457
      %s460 = sadd.s32 %s459, 1
      %p463 = scmp.eq.s32.totalorder %s47, 1
      %p464 = scmp.ne.s32.totalorder %s459, %s461
      %p465 = scmp.eq.s32.totalorder %s47, 0
      %p466 = por %p464, %p465
      %p467 = scmp.ne.s32.totalorder %s459, %s461
      %p468 = scmp.eq.s32.totalorder %s52, 1
      %p469 = por %p467, %p468
      %p470 = scmp.ne.s32.totalorder %s461, %s462
      %p471 = scmp.eq.s32.totalorder %s52, 0
      %p472 = por %p470, %p471
      %p473 = scmp.ne.s32.totalorder %s461, %s462
      %p474 = scmp.eq.s32.totalorder %s53, 1
      %p475 = por %p473, %p474
      %p477 = scmp.ne.s32.totalorder %s462, %s476
      %p478 = scmp.eq.s32.totalorder %s53, 0
      %p479 = por %p477, %p478
      %s481 = sadd.s32 %s480, 1
      %p484 = scmp.eq.s32.totalorder %s47, 1
      %p485 = scmp.ne.s32.totalorder %s480, %s482
      %p486 = scmp.eq.s32.totalorder %s47, 0
      %p487 = por %p485, %p486
      %p488 = scmp.ne.s32.totalorder %s480, %s482
      %p489 = scmp.eq.s32.totalorder %s52, 1
      %p490 = por %p488, %p489
      %p491 = scmp.ne.s32.totalorder %s482, %s483
      %p492 = scmp.eq.s32.totalorder %s52, 0
      %p493 = por %p491, %p492
      %p494 = scmp.ne.s32.totalorder %s482, %s483
      %p495 = scmp.eq.s32.totalorder %s53, 1
      %p496 = por %p494, %p495
      %p498 = scmp.ne.s32.totalorder %s483, %s497
      %p499 = scmp.eq.s32.totalorder %s53, 0
      %p500 = por %p498, %p499
      %s501 = ssub.s32 %s47, %s54
      %p502 = scmp.eq.s32.totalorder %s501, 0
      %s504 = sadd.s32 %s503, 1
      %s505 = scalar_select %p502, %s503, %s504
      %p508 = pneg %p502
      %p509 = scmp.eq.s32.totalorder %s47, 1
      %p510 = por %p508, %p509
      %p511 = scmp.ne.s32.totalorder %s503, %s506
      %p512 = scmp.eq.s32.totalorder %s47, 0
      %p513 = por %p511, %p512
      %p514 = scmp.ne.s32.totalorder %s503, %s506
      %p515 = scmp.eq.s32.totalorder %s52, 1
      %p516 = por %p514, %p515
      %p517 = scmp.ne.s32.totalorder %s506, %s507
      %p518 = scmp.eq.s32.totalorder %s52, 0
      %p519 = por %p517, %p518
      %p520 = scmp.ne.s32.totalorder %s506, %s507
      %p521 = scmp.eq.s32.totalorder %s53, 1
      %p522 = por %p520, %p521
      %p524 = scmp.ne.s32.totalorder %s507, %s523
      %p525 = scmp.eq.s32.totalorder %s53, 0
      %p526 = por %p524, %p525
      %s527 = ssub.s32 %s47, %s54
      %p528 = scmp.eq.s32.totalorder %s527, 0
      %s530 = sadd.s32 %s529, 1
      %s531 = scalar_select %p528, %s529, %s530
      %p534 = pneg %p528
      %p535 = scmp.eq.s32.totalorder %s47, 1
      %p536 = por %p534, %p535
      %p537 = scmp.ne.s32.totalorder %s529, %s532
      %p538 = scmp.eq.s32.totalorder %s47, 0
      %p539 = por %p537, %p538
      %p540 = scmp.ne.s32.totalorder %s529, %s532
      %p541 = scmp.eq.s32.totalorder %s52, 1
      %p542 = por %p540, %p541
      %p543 = scmp.ne.s32.totalorder %s532, %s533
      %p544 = scmp.eq.s32.totalorder %s52, 0
      %p545 = por %p543, %p544
      %p546 = scmp.ne.s32.totalorder %s532, %s533
      %p547 = scmp.eq.s32.totalorder %s53, 1
      %p548 = por %p546, %p547
      %p550 = scmp.ne.s32.totalorder %s533, %s549
      %p551 = scmp.eq.s32.totalorder %s53, 0
      %p552 = por %p550, %p551
      %p553 = scmp.le.s32.totalorder 1, %s47
      %p554 = scmp.lt.s32.totalorder %s47, 3
      %p555 = pnand %p553, %p554
      %p556 = pneg %p555
      // Predicated region
      $region9: #{tpu_custom_call.1} parent=5 // pred_check
        _
      $region10: #{tpu_custom_call.1} parent=5 // pred_check_branch
        %558 = sbr.rel (%p555) target = $region12
      $region11: #{tpu_custom_call.1} parent=5 // pred_region
        %s559 = ssub.s32 %s47, 1
        // Predicated region
        $region13: #{tpu_custom_call.1} parent=11 // pred_check
          %p560 = pneg %p94
        $region14: #{tpu_custom_call.1} parent=11 // pred_check_branch
          %562 = sbr.rel (%p560) target = $region16
        $region15: #{tpu_custom_call.1} parent=11 // pred_region
          %s564 = ssub.s32 1024, 1024
          %565 = vsyncadd [#allocation6], %s564
          %s566 = sshll.u32 [#allocation5], 4
          %s567 = int_to_ptr.vmem [resolvable:$true] %s566
          %572 = dma.hbm_to_vmem [thread:$0]  %s1, 1024, %s567, [#allocation6], 64, 64, 4
        $region16: #{tpu_custom_call.1} parent=11 // pred_fallthru
          _
        // Predicated region
        $region17: #{tpu_custom_call.1} parent=11 // pred_check
          %p573 = pneg %p115
        $region18: #{tpu_custom_call.1} parent=11 // pred_check_branch
          %575 = sbr.rel (%p573) target = $region20
        $region19: #{tpu_custom_call.1} parent=11 // pred_region
          %s577 = ssub.s32 16, 16
          %578 = vsyncadd [#allocation6], %s577
          %s580 = sshll.u32 [#allocation7], 4
          %s581 = int_to_ptr.vmem [resolvable:$true] %s580
          %583 = dma.hbm_to_vmem [thread:$0]  %s2, 16, %s581, [#allocation6]
        $region20: #{tpu_custom_call.1} parent=11 // pred_fallthru
          _
        // Predicated region
        $region21: #{tpu_custom_call.1} parent=11 // pred_check
          %p584 = pneg %p136
        $region22: #{tpu_custom_call.1} parent=11 // pred_check_branch
          %586 = sbr.rel (%p584) target = $region24
        $region23: #{tpu_custom_call.1} parent=11 // pred_region
          %s588 = ssub.s32 1024, 1024
          %589 = vsyncadd [#allocation9], %s588
          %s590 = sshll.u32 [#allocation8], 4
          %s591 = int_to_ptr.vmem [resolvable:$true] %s590
          %596 = dma.hbm_to_vmem [thread:$0]  %s3, 1024, %s591, [#allocation9], 64, 64, 4
        $region24: #{tpu_custom_call.1} parent=11 // pred_fallthru
          _
        // Predicated region
        $region25: #{tpu_custom_call.1} parent=11 // pred_check
          %p597 = pneg %p157
        $region26: #{tpu_custom_call.1} parent=11 // pred_check_branch
          %599 = sbr.rel (%p597) target = $region28
        $region27: #{tpu_custom_call.1} parent=11 // pred_region
          %s601 = ssub.s32 16, 16
          %602 = vsyncadd [#allocation9], %s601
          %s604 = sshll.u32 [#allocation10], 4
          %s605 = int_to_ptr.vmem [resolvable:$true] %s604
          %607 = dma.hbm_to_vmem [thread:$0]  %s4, 16, %s605, [#allocation9]
        $region28: #{tpu_custom_call.1} parent=11 // pred_fallthru
          _
        // Predicated region
        $region29: #{tpu_custom_call.1} parent=11 // pred_check
          %p608 = pneg %p178
        $region30: #{tpu_custom_call.1} parent=11 // pred_check_branch
          %610 = sbr.rel (%p608) target = $region32
        $region31: #{tpu_custom_call.1} parent=11 // pred_region
          %s612 = ssub.s32 1024, 1024
          %613 = vsyncadd [#allocation12], %s612
          %s614 = sshll.u32 [#allocation11], 4
          %s615 = int_to_ptr.vmem [resolvable:$true] %s614
          %620 = dma.hbm_to_vmem [thread:$0]  %s5, 1024, %s615, [#allocation12], 64, 64, 4
        $region32: #{tpu_custom_call.1} parent=11 // pred_fallthru
          _
        // Predicated region
        $region33: #{tpu_custom_call.1} parent=11 // pred_check
          %p621 = pneg %p199
        $region34: #{tpu_custom_call.1} parent=11 // pred_check_branch
          %623 = sbr.rel (%p621) target = $region36
        $region35: #{tpu_custom_call.1} parent=11 // pred_region
          %s625 = ssub.s32 16, 16
          %626 = vsyncadd [#allocation12], %s625
          %s628 = sshll.u32 [#allocation13], 4
          %s629 = int_to_ptr.vmem [resolvable:$true] %s628
          %631 = dma.hbm_to_vmem [thread:$0]  %s6, 16, %s629, [#allocation12]
        $region36: #{tpu_custom_call.1} parent=11 // pred_fallthru
          _
        // Predicated region
        $region37: #{tpu_custom_call.1} parent=11 // pred_check
          %p632 = pneg %p220
        $region38: #{tpu_custom_call.1} parent=11 // pred_check_branch
          %634 = sbr.rel (%p632) target = $region40
        $region39: #{tpu_custom_call.1} parent=11 // pred_region
          %s636 = ssub.s32 1024, 1024
          %637 = vsyncadd [#allocation15], %s636
          %s638 = sshll.u32 [#allocation14], 4
          %s639 = int_to_ptr.vmem [resolvable:$true] %s638
          %644 = dma.hbm_to_vmem [thread:$0]  %s7, 1024, %s639, [#allocation15], 64, 64, 4
        $region40: #{tpu_custom_call.1} parent=11 // pred_fallthru
          _
        // Predicated region
        $region41: #{tpu_custom_call.1} parent=11 // pred_check
          %p645 = pneg %p241
        $region42: #{tpu_custom_call.1} parent=11 // pred_check_branch
          %647 = sbr.rel (%p645) target = $region44
        $region43: #{tpu_custom_call.1} parent=11 // pred_region
          %s649 = ssub.s32 16, 16
          %650 = vsyncadd [#allocation15], %s649
          %s652 = sshll.u32 [#allocation16], 4
          %s653 = int_to_ptr.vmem [resolvable:$true] %s652
          %655 = dma.hbm_to_vmem [thread:$0]  %s8, 16, %s653, [#allocation15]
        $region44: #{tpu_custom_call.1} parent=11 // pred_fallthru
          _
        // Predicated region
        $region45: #{tpu_custom_call.1} parent=11 // pred_check
          %p656 = pneg %p262
        $region46: #{tpu_custom_call.1} parent=11 // pred_check_branch
          %658 = sbr.rel (%p656) target = $region48
        $region47: #{tpu_custom_call.1} parent=11 // pred_region
          %s660 = ssub.s32 1024, 1024
          %661 = vsyncadd [#allocation18], %s660
          %s662 = sshll.u32 [#allocation17], 4
          %s663 = int_to_ptr.vmem [resolvable:$true] %s662
          %668 = dma.hbm_to_vmem [thread:$0]  %s9, 1024, %s663, [#allocation18], 64, 64, 4
        $region48: #{tpu_custom_call.1} parent=11 // pred_fallthru
          _
        // Predicated region
        $region49: #{tpu_custom_call.1} parent=11 // pred_check
          %p669 = pneg %p283
        $region50: #{tpu_custom_call.1} parent=11 // pred_check_branch
          %671 = sbr.rel (%p669) target = $region52
        $region51: #{tpu_custom_call.1} parent=11 // pred_region
          %s673 = ssub.s32 16, 16
          %674 = vsyncadd [#allocation18], %s673
          %s676 = sshll.u32 [#allocation19], 4
          %s677 = int_to_ptr.vmem [resolvable:$true] %s676
          %679 = dma.hbm_to_vmem [thread:$0]  %s10, 16, %s677, [#allocation18]
        $region52: #{tpu_custom_call.1} parent=11 // pred_fallthru
          _
        // Predicated region
        $region53: #{tpu_custom_call.1} parent=11 // pred_check
          %p680 = pneg %p304
        $region54: #{tpu_custom_call.1} parent=11 // pred_check_branch
          %682 = sbr.rel (%p680) target = $region56
        $region55: #{tpu_custom_call.1} parent=11 // pred_region
          %s684 = ssub.s32 1024, 1024
          %685 = vsyncadd [#allocation21], %s684
          %s686 = sshll.u32 [#allocation20], 4
          %s687 = int_to_ptr.vmem [resolvable:$true] %s686
          %692 = dma.hbm_to_vmem [thread:$0]  %s11, 1024, %s687, [#allocation21], 64, 64, 4
        $region56: #{tpu_custom_call.1} parent=11 // pred_fallthru
          _
        // Predicated region
        $region57: #{tpu_custom_call.1} parent=11 // pred_check
          %p693 = pneg %p325
        $region58: #{tpu_custom_call.1} parent=11 // pred_check_branch
          %695 = sbr.rel (%p693) target = $region60
        $region59: #{tpu_custom_call.1} parent=11 // pred_region
          %s697 = ssub.s32 16, 16
          %698 = vsyncadd [#allocation21], %s697
          %s700 = sshll.u32 [#allocation22], 4
          %s701 = int_to_ptr.vmem [resolvable:$true] %s700
          %703 = dma.hbm_to_vmem [thread:$0]  %s12, 16, %s701, [#allocation21]
        $region60: #{tpu_custom_call.1} parent=11 // pred_fallthru
          _
        // Predicated region
        $region61: #{tpu_custom_call.1} parent=11 // pred_check
          %p704 = pneg %p346
        $region62: #{tpu_custom_call.1} parent=11 // pred_check_branch
          %706 = sbr.rel (%p704) target = $region64
        $region63: #{tpu_custom_call.1} parent=11 // pred_region
          %s708 = ssub.s32 1024, 1024
          %709 = vsyncadd [#allocation24], %s708
          %s710 = sshll.u32 [#allocation23], 4
          %s711 = int_to_ptr.vmem [resolvable:$true] %s710
          %716 = dma.hbm_to_vmem [thread:$0]  %s13, 1024, %s711, [#allocation24], 64, 64, 4
        $region64: #{tpu_custom_call.1} parent=11 // pred_fallthru
          _
        // Predicated region
        $region65: #{tpu_custom_call.1} parent=11 // pred_check
          %p717 = pneg %p367
        $region66: #{tpu_custom_call.1} parent=11 // pred_check_branch
          %719 = sbr.rel (%p717) target = $region68
        $region67: #{tpu_custom_call.1} parent=11 // pred_region
          %s721 = ssub.s32 16, 16
          %722 = vsyncadd [#allocation24], %s721
          %s724 = sshll.u32 [#allocation25], 4
          %s725 = int_to_ptr.vmem [resolvable:$true] %s724
          %727 = dma.hbm_to_vmem [thread:$0]  %s14, 16, %s725, [#allocation24]
        $region68: #{tpu_custom_call.1} parent=11 // pred_fallthru
          _
        // Predicated region
        $region69: #{tpu_custom_call.1} parent=11 // pred_check
          %p728 = pneg %p388
        $region70: #{tpu_custom_call.1} parent=11 // pred_check_branch
          %730 = sbr.rel (%p728) target = $region72
        $region71: #{tpu_custom_call.1} parent=11 // pred_region
          %s732 = ssub.s32 1024, 1024
          %733 = vsyncadd [#allocation27], %s732
          %s734 = sshll.u32 [#allocation26], 4
          %s735 = int_to_ptr.vmem [resolvable:$true] %s734
          %740 = dma.hbm_to_vmem [thread:$0]  %s15, 1024, %s735, [#allocation27], 64, 64, 4
        $region72: #{tpu_custom_call.1} parent=11 // pred_fallthru
          _
        // Predicated region
        $region73: #{tpu_custom_call.1} parent=11 // pred_check
          %p741 = pneg %p409
        $region74: #{tpu_custom_call.1} parent=11 // pred_check_branch
          %743 = sbr.rel (%p741) target = $region76
        $region75: #{tpu_custom_call.1} parent=11 // pred_region
          %s745 = ssub.s32 16, 16
          %746 = vsyncadd [#allocation27], %s745
          %s748 = sshll.u32 [#allocation28], 4
          %s749 = int_to_ptr.vmem [resolvable:$true] %s748
          %751 = dma.hbm_to_vmem [thread:$0]  %s16, 16, %s749, [#allocation27]
        $region76: #{tpu_custom_call.1} parent=11 // pred_fallthru
          _
        // Predicated region
        $region77: #{tpu_custom_call.1} parent=11 // pred_check
          %p752 = pneg %p430
        $region78: #{tpu_custom_call.1} parent=11 // pred_check_branch
          %754 = sbr.rel (%p752) target = $region80
        $region79: #{tpu_custom_call.1} parent=11 // pred_region
          _
        $region80: #{tpu_custom_call.1} parent=11 // pred_fallthru
          _
        // Predicated region
        $region81: #{tpu_custom_call.1} parent=11 // pred_check
          %p755 = pneg %p451
        $region82: #{tpu_custom_call.1} parent=11 // pred_check_branch
          %757 = sbr.rel (%p755) target = $region84
        $region83: #{tpu_custom_call.1} parent=11 // pred_region
          _
        $region84: #{tpu_custom_call.1} parent=11 // pred_fallthru
          _
        // Predicated region
        $region85: #{tpu_custom_call.1} parent=11 // pred_check
          %p758 = pneg %p472
        $region86: #{tpu_custom_call.1} parent=11 // pred_check_branch
          %760 = sbr.rel (%p758) target = $region88
        $region87: #{tpu_custom_call.1} parent=11 // pred_region
          %s762 = ssub.s32 1024, 1024
          %763 = vsyncadd [#allocation30], %s762
          %s764 = sshll.u32 [#allocation29], 4
          %s765 = int_to_ptr.vmem [resolvable:$true] %s764
          %770 = dma.hbm_to_vmem [thread:$0]  %s19, 1024, %s765, [#allocation30], 64, 64, 4
        $region88: #{tpu_custom_call.1} parent=11 // pred_fallthru
          _
        // Predicated region
        $region89: #{tpu_custom_call.1} parent=11 // pred_check
          %p771 = pneg %p493
        $region90: #{tpu_custom_call.1} parent=11 // pred_check_branch
          %773 = sbr.rel (%p771) target = $region92
        $region91: #{tpu_custom_call.1} parent=11 // pred_region
          _
        $region92: #{tpu_custom_call.1} parent=11 // pred_fallthru
          _
      $region12: #{tpu_custom_call.1} parent=5 // pred_fallthru
        _
      %p774 = scmp.lt.s32.totalorder %s47, 2
      // Predicated region
      $region93: #{tpu_custom_call.1} parent=5 // pred_check
        %p775 = pneg %p774
      $region94: #{tpu_custom_call.1} parent=5 // pred_check_branch
        %777 = sbr.rel (%p775) target = $region96
      $region95: #{tpu_custom_call.1} parent=5 // pred_region
        // Predicated region
        $region97: #{tpu_custom_call.1} parent=95 // pred_check
          %p778 = pneg %p67
        $region98: #{tpu_custom_call.1} parent=95 // pred_check_branch
          %780 = sbr.rel (%p778) target = $region100
        $region99: #{tpu_custom_call.1} parent=95 // pred_region
          #allocation35 [shape = 'u32[6]{0}', space=smem, size = 0x18, scoped, tag = 'DMA stride descriptor']
          %s781 = sand.u32 %s57, 1
          %s782 = scalar_lea.sflag [#allocation3], %s781
          %s783 = sand.u32 %s57, 1
          %s784 = smul.addr %s783, 16
          %s785 = scalar_lea.vmem [#allocation2], %s784
          %s786 = smul.u32 2, %s47
          %s788 = ssub.s32 256, 256
          %789 = vsyncadd %s782, %s788
          %s790 = smul.addr %s786, 64
          %s791 = scalar_lea.hbm %s0, %s790
          %s793 = sshll.u32 1, 14
          %s794 = sxor.u32 4294967295, %s793
          %s796 = sld [smem:[#allocation0]]
          %s797 = sadd.s32 2, %s796
          %s799 = sshll.u32 7, 26
          %s800 = sxor.u32 4294967295, %s799
          %s801 = sand.u32 0, %s800
          %s802 = sshll.u32 %s797, 26
          %s803 = sor.u32 %s801, %s802
          %s804 = sshll.u32 %s785, 4
          %s805 = int_to_ptr.vmem [resolvable:$true] %s804
          %811 = sst [smem:[#allocation35]] 256
          %s812 = scalar_lea.smem [#allocation35], 1
          %813 = sst [smem:[%s812]] 128
          %s814 = scalar_lea.smem [#allocation35], 2
          %815 = sst [smem:[%s814]] 2
          %s816 = scalar_lea.smem [#allocation35], 3
          %817 = sst [smem:[%s816]] 64
          %s818 = scalar_lea.smem [#allocation35], 4
          %819 = sst [smem:[%s818]] 64
          %s820 = scalar_lea.smem [#allocation35], 5
          %821 = sst [smem:[%s820]] 4
          %823 = dma.general %s791, 256, %s805, %s782, [#allocation34], [#allocation35], %s803, 0
        $region100: #{tpu_custom_call.1} parent=95 // pred_fallthru
          _
      $region96: #{tpu_custom_call.1} parent=5 // pred_fallthru
        _
      %p824 = scmp.le.s32.totalorder 1, %s47
      %p825 = scmp.lt.s32.totalorder %s47, 3
      %p826 = pnand %p824, %p825
      %p827 = pneg %p826
      // Predicated region
      $region101: #{tpu_custom_call.1} parent=5 // pred_check
        _
      $region102: #{tpu_custom_call.1} parent=5 // pred_check_branch
        %829 = sbr.rel (%p826) target = $region104
      $region103: #{tpu_custom_call.1} parent=5 // pred_region
        %s830 = ssub.s32 %s47, 1
        %s831 = sand.u32 %s60, 1
        %s832 = scalar_lea.sflag [#allocation3], %s831
        %s833 = sand.u32 %s60, 1
        %s834 = smul.addr %s833, 16
        %s835 = scalar_lea.vmem [#allocation2], %s834
        // Predicated region
        $region105: #{tpu_custom_call.1} parent=103 // pred_check
          %p836 = pneg %p73
        $region106: #{tpu_custom_call.1} parent=103 // pred_check_branch
          %838 = sbr.rel (%p836) target = $region108
        $region107: #{tpu_custom_call.1} parent=103 // pred_region
          %839 = dma.done %s832, 256
        $region108: #{tpu_custom_call.1} parent=103 // pred_fallthru
          _
        // Predicated region
        $region109: #{tpu_custom_call.1} parent=103 // pred_check
          %p840 = pneg %p94
        $region110: #{tpu_custom_call.1} parent=103 // pred_check_branch
          %842 = sbr.rel (%p840) target = $region112
        $region111: #{tpu_custom_call.1} parent=103 // pred_region
          %843 = dma.done [#allocation6], 1024
        $region112: #{tpu_custom_call.1} parent=103 // pred_fallthru
          _
        // Predicated region
        $region113: #{tpu_custom_call.1} parent=103 // pred_check
          %p844 = pneg %p115
        $region114: #{tpu_custom_call.1} parent=103 // pred_check_branch
          %846 = sbr.rel (%p844) target = $region116
        $region115: #{tpu_custom_call.1} parent=103 // pred_region
          %847 = dma.done [#allocation6], 16
        $region116: #{tpu_custom_call.1} parent=103 // pred_fallthru
          _
        // Predicated region
        $region117: #{tpu_custom_call.1} parent=103 // pred_check
          %p848 = pneg %p136
        $region118: #{tpu_custom_call.1} parent=103 // pred_check_branch
          %850 = sbr.rel (%p848) target = $region120
        $region119: #{tpu_custom_call.1} parent=103 // pred_region
          %851 = dma.done [#allocation9], 1024
        $region120: #{tpu_custom_call.1} parent=103 // pred_fallthru
          _
        // Predicated region
        $region121: #{tpu_custom_call.1} parent=103 // pred_check
          %p852 = pneg %p157
        $region122: #{tpu_custom_call.1} parent=103 // pred_check_branch
          %854 = sbr.rel (%p852) target = $region124
        $region123: #{tpu_custom_call.1} parent=103 // pred_region
          %855 = dma.done [#allocation9], 16
        $region124: #{tpu_custom_call.1} parent=103 // pred_fallthru
          _
        // Predicated region
        $region125: #{tpu_custom_call.1} parent=103 // pred_check
          %p856 = pneg %p178
        $region126: #{tpu_custom_call.1} parent=103 // pred_check_branch
          %858 = sbr.rel (%p856) target = $region128
        $region127: #{tpu_custom_call.1} parent=103 // pred_region
          %859 = dma.done [#allocation12], 1024
        $region128: #{tpu_custom_call.1} parent=103 // pred_fallthru
          _
        // Predicated region
        $region129: #{tpu_custom_call.1} parent=103 // pred_check
          %p860 = pneg %p199
        $region130: #{tpu_custom_call.1} parent=103 // pred_check_branch
          %862 = sbr.rel (%p860) target = $region132
        $region131: #{tpu_custom_call.1} parent=103 // pred_region
          %863 = dma.done [#allocation12], 16
        $region132: #{tpu_custom_call.1} parent=103 // pred_fallthru
          _
        // Predicated region
        $region133: #{tpu_custom_call.1} parent=103 // pred_check
          %p864 = pneg %p220
        $region134: #{tpu_custom_call.1} parent=103 // pred_check_branch
          %866 = sbr.rel (%p864) target = $region136
        $region135: #{tpu_custom_call.1} parent=103 // pred_region
          %867 = dma.done [#allocation15], 1024
        $region136: #{tpu_custom_call.1} parent=103 // pred_fallthru
          _
        // Predicated region
        $region137: #{tpu_custom_call.1} parent=103 // pred_check
          %p868 = pneg %p241
        $region138: #{tpu_custom_call.1} parent=103 // pred_check_branch
          %870 = sbr.rel (%p868) target = $region140
        $region139: #{tpu_custom_call.1} parent=103 // pred_region
          %871 = dma.done [#allocation15], 16
        $region140: #{tpu_custom_call.1} parent=103 // pred_fallthru
          _
        // Predicated region
        $region141: #{tpu_custom_call.1} parent=103 // pred_check
          %p872 = pneg %p262
        $region142: #{tpu_custom_call.1} parent=103 // pred_check_branch
          %874 = sbr.rel (%p872) target = $region144
        $region143: #{tpu_custom_call.1} parent=103 // pred_region
          %875 = dma.done [#allocation18], 1024
        $region144: #{tpu_custom_call.1} parent=103 // pred_fallthru
          _
        // Predicated region
        $region145: #{tpu_custom_call.1} parent=103 // pred_check
          %p876 = pneg %p283
        $region146: #{tpu_custom_call.1} parent=103 // pred_check_branch
          %878 = sbr.rel (%p876) target = $region148
        $region147: #{tpu_custom_call.1} parent=103 // pred_region
          %879 = dma.done [#allocation18], 16
        $region148: #{tpu_custom_call.1} parent=103 // pred_fallthru
          _
        // Predicated region
        $region149: #{tpu_custom_call.1} parent=103 // pred_check
          %p880 = pneg %p304
        $region150: #{tpu_custom_call.1} parent=103 // pred_check_branch
          %882 = sbr.rel (%p880) target = $region152
        $region151: #{tpu_custom_call.1} parent=103 // pred_region
          %883 = dma.done [#allocation21], 1024
        $region152: #{tpu_custom_call.1} parent=103 // pred_fallthru
          _
        // Predicated region
        $region153: #{tpu_custom_call.1} parent=103 // pred_check
          %p884 = pneg %p325
        $region154: #{tpu_custom_call.1} parent=103 // pred_check_branch
          %886 = sbr.rel (%p884) target = $region156
        $region155: #{tpu_custom_call.1} parent=103 // pred_region
          %887 = dma.done [#allocation21], 16
        $region156: #{tpu_custom_call.1} parent=103 // pred_fallthru
          _
        // Predicated region
        $region157: #{tpu_custom_call.1} parent=103 // pred_check
          %p888 = pneg %p346
        $region158: #{tpu_custom_call.1} parent=103 // pred_check_branch
          %890 = sbr.rel (%p888) target = $region160
        $region159: #{tpu_custom_call.1} parent=103 // pred_region
          %891 = dma.done [#allocation24], 1024
        $region160: #{tpu_custom_call.1} parent=103 // pred_fallthru
          _
        // Predicated region
        $region161: #{tpu_custom_call.1} parent=103 // pred_check
          %p892 = pneg %p367
        $region162: #{tpu_custom_call.1} parent=103 // pred_check_branch
          %894 = sbr.rel (%p892) target = $region164
        $region163: #{tpu_custom_call.1} parent=103 // pred_region
          %895 = dma.done [#allocation24], 16
        $region164: #{tpu_custom_call.1} parent=103 // pred_fallthru
          _
        // Predicated region
        $region165: #{tpu_custom_call.1} parent=103 // pred_check
          %p896 = pneg %p388
        $region166: #{tpu_custom_call.1} parent=103 // pred_check_branch
          %898 = sbr.rel (%p896) target = $region168
        $region167: #{tpu_custom_call.1} parent=103 // pred_region
          %899 = dma.done [#allocation27], 1024
        $region168: #{tpu_custom_call.1} parent=103 // pred_fallthru
          _
        // Predicated region
        $region169: #{tpu_custom_call.1} parent=103 // pred_check
          %p900 = pneg %p409
        $region170: #{tpu_custom_call.1} parent=103 // pred_check_branch
          %902 = sbr.rel (%p900) target = $region172
        $region171: #{tpu_custom_call.1} parent=103 // pred_region
          %903 = dma.done [#allocation27], 16
        $region172: #{tpu_custom_call.1} parent=103 // pred_fallthru
          _
        // Predicated region
        $region173: #{tpu_custom_call.1} parent=103 // pred_check
          %p904 = pneg %p472
        $region174: #{tpu_custom_call.1} parent=103 // pred_check_branch
          %906 = sbr.rel (%p904) target = $region176
        $region175: #{tpu_custom_call.1} parent=103 // pred_region
          %907 = dma.done [#allocation30], 1024
        $region176: #{tpu_custom_call.1} parent=103 // pred_fallthru
          _
        %s908 = sand.u32 %s60, 1
        %s909 = scalar_lea.sflag [#allocation3], %s908
        %s910 = sand.u32 %s60, 1
        %s911 = smul.addr %s910, 16
        %s912 = scalar_lea.vmem [#allocation2], %s911
        %p913 = pneg %p73
        %p914 = pneg %p70
        %p915 = pneg %p94
        %p916 = pneg %p91
        %p917 = pneg %p115
        %p918 = pneg %p112
        %p919 = pneg %p136
        %p920 = pneg %p133
        %p921 = pneg %p157
        %p922 = pneg %p154
        %p923 = pneg %p178
        %p924 = pneg %p175
        %p925 = pneg %p199
        %p926 = pneg %p196
        %p927 = pneg %p220
        %p928 = pneg %p217
        %p929 = pneg %p241
        %p930 = pneg %p238
        %p931 = pneg %p262
        %p932 = pneg %p259
        %p933 = pneg %p283
        %p934 = pneg %p280
        %p935 = pneg %p304
        %p936 = pneg %p301
        %p937 = pneg %p325
        %p938 = pneg %p322
        %p939 = pneg %p346
        %p940 = pneg %p343
        %p941 = pneg %p367
        %p942 = pneg %p364
        %p943 = pneg %p388
        %p944 = pneg %p385
        %p945 = pneg %p409
        %p946 = pneg %p406
        %p947 = pneg %p430
        %p948 = pneg %p427
        %p949 = pneg %p451
        %p950 = pneg %p448
        %p951 = pneg %p472
        %p952 = pneg %p469
        %p953 = pneg %p493
        %p954 = pneg %p490
        %p955 = pneg %p519
        %p956 = pneg %p516
        %s957 = sand.u32 %s506, 1
        %s958 = scalar_lea.sflag [#allocation4], %s957
        %s959 = sand.u32 %s506, 1
        %s960 = smul.addr %s959, 16
        %s961 = scalar_lea.vmem [#allocation31], %s960
        %p962 = pneg %p545
        %p963 = pneg %p542
        %s964 = sand.u32 %s532, 1
        %s965 = scalar_lea.sflag [#allocation33], %s964
        %s966 = sand.u32 %s532, 1
        %s967 = smul.addr %s966, 16
        %s968 = scalar_lea.vmem [#allocation32], %s967
        %s969 = smul.u32 2, %s52
        %s970 = smul.u32 2, %s52
        %s971 = smul.u32 2, %s52
        %v973 = vld [vmem:[%s835] sm:$0xf]
        %v974 = vld [vmem:[%s835 + $0x4] sm:$0xf]
        %v975 = vld [vmem:[%s835 + $0x8] sm:$0xf]
        %v976 = vld [vmem:[%s835 + $0xc] sm:$0xf]
        %v977 = vunpack.c.l.bf16 %v973
        %v978 = vunpack.c.l.bf16 %v974
        %v979 = vunpack.c.l.bf16 %v975
        %v980 = vunpack.c.l.bf16 %v976
        %v981 = vld [vmem:[#allocation5] sm:$0xf]
        %v982 = vld [vmem:[#allocation5 + $0x4] sm:$0xf]
        %v983 = vld [vmem:[#allocation5 + $0x8] sm:$0xf]
        %v984 = vld [vmem:[#allocation5 + $0xc] sm:$0xf]
        %v985 = vld [vmem:[#allocation5 + $0x10] sm:$0xf]
        %v986 = vld [vmem:[#allocation5 + $0x14] sm:$0xf]
        %v987 = vld [vmem:[#allocation5 + $0x18] sm:$0xf]
        %v988 = vld [vmem:[#allocation5 + $0x1c] sm:$0xf]
        %v989 = vld [vmem:[#allocation5 + $0x20] sm:$0xf]
        %v990 = vld [vmem:[#allocation5 + $0x24] sm:$0xf]
        %v991 = vld [vmem:[#allocation5 + $0x28] sm:$0xf]
        %v992 = vld [vmem:[#allocation5 + $0x2c] sm:$0xf]
        %v993 = vld [vmem:[#allocation5 + $0x30] sm:$0xf]
        %v994 = vld [vmem:[#allocation5 + $0x34] sm:$0xf]
        %v995 = vld [vmem:[#allocation5 + $0x38] sm:$0xf]
        %v996 = vld [vmem:[#allocation5 + $0x3c] sm:$0xf]
        %v997 = vld [vmem:[#allocation7] sm:$0x1]
        %v999 = vlaneseq
        %v1000 = vshrl.u32 %v999, 7
        %v1001 = vsub.s32 0, %v1000
        %v1002 = vrot.slane %v997, %v1001
        %v1008 = vunpack.c.l.b16 %v973
        %v1009 = vunpack.c.l.b16 %v974
        %v1010 = vunpack.c.l.b16 %v975
        %v1011 = vunpack.c.l.b16 %v976
        %v1012 = vpack.c.b16 %v1009, %v1008
        %v1013 = vpack.c.b16 %v1011, %v1010
        %v1032 = vunpack.c.l.b16 %v981
        %v1033 = vunpack.c.l.b16 %v982
        %v1034 = vunpack.c.l.b16 %v983
        %v1035 = vunpack.c.l.b16 %v984
        %v1036 = vunpack.c.l.b16 %v985
        %v1037 = vunpack.c.l.b16 %v986
        %v1038 = vunpack.c.l.b16 %v987
        %v1039 = vunpack.c.l.b16 %v988
        %v1040 = vunpack.c.l.b16 %v989
        %v1041 = vunpack.c.l.b16 %v990
        %v1042 = vunpack.c.l.b16 %v991
        %v1043 = vunpack.c.l.b16 %v992
        %v1044 = vunpack.c.l.b16 %v993
        %v1045 = vunpack.c.l.b16 %v994
        %v1046 = vunpack.c.l.b16 %v995
        %v1047 = vunpack.c.l.b16 %v996
        %v1048 = vpack.c.b16 %v1033, %v1032
        %v1049 = vpack.c.b16 %v1035, %v1034
        %v1050 = vpack.c.b16 %v1037, %v1036
        %v1051 = vpack.c.b16 %v1039, %v1038
        %v1052 = vpack.c.b16 %v1041, %v1040
        %v1053 = vpack.c.b16 %v1043, %v1042
        %v1054 = vpack.c.b16 %v1045, %v1044
        %v1055 = vpack.c.b16 %v1047, %v1046
        %1064 = vmatprep.subr.bf16.mxu0 0
        %1065 = vmatpush1.bf16.msra.mxu0 %v1048
        %1066 = vmatprep.subr.bf16.mxu0 0
        %1067 = vmatpush1.bf16.msra.mxu0 %v1049
        %1068 = vmatprep.subr.bf16.mxu0 0
        %1069 = vmatpush1.bf16.msra.mxu0 %v1050
        %1070 = vmatprep.subr.bf16.mxu0 0
        %1071 = vmatpush1.bf16.msra.mxu0 %v1051
        %1072 = vmatprep.subr.bf16.mxu0 0
        %1073 = vmatpush1.bf16.msra.mxu0 %v1052
        %1074 = vmatprep.subr.bf16.mxu0 0
        %1075 = vmatpush1.bf16.msra.mxu0 %v1053
        %1076 = vmatprep.subr.bf16.mxu0 0
        %1077 = vmatpush1.bf16.msra.mxu0 %v1054
        %1078 = vmatprep.subr.bf16.mxu0 0
        %1079 = vmatpush1.bf16.msra.mxu0 %v1055
        %1080 = vmatprep.subr.bf16.mxu0 0
        %1081 = vmatpush1.bf16.msra.mxu0 0
        %1082 = vmatprep.subr.bf16.mxu0 0
        %1083 = vmatpush1.bf16.msra.mxu0 0
        %1084 = vmatprep.subr.bf16.mxu0 0
        %1085 = vmatpush1.bf16.msra.mxu0 0
        %1086 = vmatprep.subr.bf16.mxu0 0
        %1087 = vmatpush1.bf16.msra.mxu0 0
        %1088 = vmatprep.subr.bf16.mxu0 0
        %1089 = vmatpush1.bf16.msra.mxu0 0
        %1090 = vmatprep.subr.bf16.mxu0 0
        %1091 = vmatpush1.bf16.msra.mxu0 0
        %1092 = vmatprep.subr.bf16.mxu0 0
        %1093 = vmatpush1.bf16.msra.mxu0 0
        %1094 = vmatprep.subr.bf16.mxu0 0
        %1095 = vmatpush1.bf16.msra.mxu0 0
        %1096 = vmatprep.mubr.bf16.mxu0 0
        %1097 = vmatmul.mubr.bf16.gmra.mrb[0].mxu0 %v1012
        %v1098 = vpop.f32.mrb[0].mxu0
        %v1099 = vadd.f32 %v1002, %v1098
        %v1100 = vpop.f32.mrb[0].mxu0
        %v1101 = vpop.f32.mrb[0].mxu0
        %v1102 = vadd.f32 %v1002, %v1101
        %v1103 = vpop.f32.mrb[0].mxu0
        %1104 = vmatprep.mubr.bf16.mxu0 0
        %1105 = vmatmul.mubr.bf16.gmra.mrb[0].mxu0 %v1013
        %v1106 = vpop.f32.mrb[0].mxu0
        %v1107 = vadd.f32 %v1002, %v1106
        %v1108 = vpop.f32.mrb[0].mxu0
        %v1109 = vpop.f32.mrb[0].mxu0
        %v1110 = vadd.f32 %v1002, %v1109
        %v1111 = vpop.f32.mrb[0].mxu0
        %1112 = vdwg.mxu0
        %v1113 = vmax.f32 %v1099, 0.0
        %v1114 = vmax.f32 %v1102, 0.0
        %v1115 = vmax.f32 %v1107, 0.0
        %v1116 = vmax.f32 %v1110, 0.0
        %v1117 = vpack.c.bf16 %v1114, %v1113
        %v1118 = vpack.c.bf16 %v1116, %v1115
        %v1119 = vld [vmem:[#allocation8] sm:$0xf]
        %v1120 = vld [vmem:[#allocation8 + $0x4] sm:$0xf]
        %v1121 = vld [vmem:[#allocation8 + $0x8] sm:$0xf]
        %v1122 = vld [vmem:[#allocation8 + $0xc] sm:$0xf]
        %v1123 = vld [vmem:[#allocation8 + $0x10] sm:$0xf]
        %v1124 = vld [vmem:[#allocation8 + $0x14] sm:$0xf]
        %v1125 = vld [vmem:[#allocation8 + $0x18] sm:$0xf]
        %v1126 = vld [vmem:[#allocation8 + $0x1c] sm:$0xf]
        %v1127 = vld [vmem:[#allocation8 + $0x20] sm:$0xf]
        %v1128 = vld [vmem:[#allocation8 + $0x24] sm:$0xf]
        %v1129 = vld [vmem:[#allocation8 + $0x28] sm:$0xf]
        %v1130 = vld [vmem:[#allocation8 + $0x2c] sm:$0xf]
        %v1131 = vld [vmem:[#allocation8 + $0x30] sm:$0xf]
        %v1132 = vld [vmem:[#allocation8 + $0x34] sm:$0xf]
        %v1133 = vld [vmem:[#allocation8 + $0x38] sm:$0xf]
        %v1134 = vld [vmem:[#allocation8 + $0x3c] sm:$0xf]
        %v1135 = vld [vmem:[#allocation10] sm:$0x1]
        %v1137 = vlaneseq
        %v1138 = vshrl.u32 %v1137, 7
        %v1139 = vsub.s32 0, %v1138
        %v1140 = vrot.slane %v1135, %v1139
        %v1158 = vunpack.c.l.b16 %v1119
        %v1159 = vunpack.c.l.b16 %v1120
        %v1160 = vunpack.c.l.b16 %v1121
        %v1161 = vunpack.c.l.b16 %v1122
        %v1162 = vunpack.c.l.b16 %v1123
        %v1163 = vunpack.c.l.b16 %v1124
        %v1164 = vunpack.c.l.b16 %v1125
        %v1165 = vunpack.c.l.b16 %v1126
        %v1166 = vunpack.c.l.b16 %v1127
        %v1167 = vunpack.c.l.b16 %v1128
        %v1168 = vunpack.c.l.b16 %v1129
        %v1169 = vunpack.c.l.b16 %v1130
        %v1170 = vunpack.c.l.b16 %v1131
        %v1171 = vunpack.c.l.b16 %v1132
        %v1172 = vunpack.c.l.b16 %v1133
        %v1173 = vunpack.c.l.b16 %v1134
        %v1174 = vpack.c.b16 %v1159, %v1158
        %v1175 = vpack.c.b16 %v1161, %v1160
        %v1176 = vpack.c.b16 %v1163, %v1162
        %v1177 = vpack.c.b16 %v1165, %v1164
        %v1178 = vpack.c.b16 %v1167, %v1166
        %v1179 = vpack.c.b16 %v1169, %v1168
        %v1180 = vpack.c.b16 %v1171, %v1170
        %v1181 = vpack.c.b16 %v1173, %v1172
        %1190 = vmatprep.subr.bf16.mxu0 0
        %1191 = vmatpush1.bf16.msra.mxu0 %v1174
        %1192 = vmatprep.subr.bf16.mxu0 0
        %1193 = vmatpush1.bf16.msra.mxu0 %v1175
        %1194 = vmatprep.subr.bf16.mxu0 0
        %1195 = vmatpush1.bf16.msra.mxu0 %v1176
        %1196 = vmatprep.subr.bf16.mxu0 0
        %1197 = vmatpush1.bf16.msra.mxu0 %v1177
        %1198 = vmatprep.subr.bf16.mxu0 0
        %1199 = vmatpush1.bf16.msra.mxu0 %v1178
        %1200 = vmatprep.subr.bf16.mxu0 0
        %1201 = vmatpush1.bf16.msra.mxu0 %v1179
        %1202 = vmatprep.subr.bf16.mxu0 0
        %1203 = vmatpush1.bf16.msra.mxu0 %v1180
        %1204 = vmatprep.subr.bf16.mxu0 0
        %1205 = vmatpush1.bf16.msra.mxu0 %v1181
        %1206 = vmatprep.subr.bf16.mxu0 0
        %1207 = vmatpush1.bf16.msra.mxu0 0
        %1208 = vmatprep.subr.bf16.mxu0 0
        %1209 = vmatpush1.bf16.msra.mxu0 0
        %1210 = vmatprep.subr.bf16.mxu0 0
        %1211 = vmatpush1.bf16.msra.mxu0 0
        %1212 = vmatprep.subr.bf16.mxu0 0
        %1213 = vmatpush1.bf16.msra.mxu0 0
        %1214 = vmatprep.subr.bf16.mxu0 0
        %1215 = vmatpush1.bf16.msra.mxu0 0
        %1216 = vmatprep.subr.bf16.mxu0 0
        %1217 = vmatpush1.bf16.msra.mxu0 0
        %1218 = vmatprep.subr.bf16.mxu0 0
        %1219 = vmatpush1.bf16.msra.mxu0 0
        %1220 = vmatprep.subr.bf16.mxu0 0
        %1221 = vmatpush1.bf16.msra.mxu0 0
        %1222 = vmatprep.mubr.bf16.mxu0 0
        %1223 = vmatmul.mubr.bf16.gmra.mrb[0].mxu0 %v1117
        %v1224 = vpop.f32.mrb[0].mxu0
        %v1225 = vadd.f32 %v1140, %v1224
        %v1226 = vpop.f32.mrb[0].mxu0
        %v1227 = vpop.f32.mrb[0].mxu0
        %v1228 = vadd.f32 %v1140, %v1227
        %v1229 = vpop.f32.mrb[0].mxu0
        %1230 = vmatprep.mubr.bf16.mxu0 0
        %1231 = vmatmul.mubr.bf16.gmra.mrb[0].mxu0 %v1118
        %v1232 = vpop.f32.mrb[0].mxu0
        %v1233 = vadd.f32 %v1140, %v1232
        %v1234 = vpop.f32.mrb[0].mxu0
        %v1235 = vpop.f32.mrb[0].mxu0
        %v1236 = vadd.f32 %v1140, %v1235
        %v1237 = vpop.f32.mrb[0].mxu0
        %1238 = vdwg.mxu0
        %v1239 = vadd.f32 %v1225, %v977
        %v1240 = vadd.f32 %v1228, %v978
        %v1241 = vadd.f32 %v1233, %v979
        %v1242 = vadd.f32 %v1236, %v980
        %v1243 = vpack.c.bf16 %v1240, %v1239
        %v1244 = vpack.c.bf16 %v1242, %v1241
        %v1245 = vld [vmem:[#allocation11] sm:$0xf]
        %v1246 = vld [vmem:[#allocation11 + $0x4] sm:$0xf]
        %v1247 = vld [vmem:[#allocation11 + $0x8] sm:$0xf]
        %v1248 = vld [vmem:[#allocation11 + $0xc] sm:$0xf]
        %v1249 = vld [vmem:[#allocation11 + $0x10] sm:$0xf]
        %v1250 = vld [vmem:[#allocation11 + $0x14] sm:$0xf]
        %v1251 = vld [vmem:[#allocation11 + $0x18] sm:$0xf]
        %v1252 = vld [vmem:[#allocation11 + $0x1c] sm:$0xf]
        %v1253 = vld [vmem:[#allocation11 + $0x20] sm:$0xf]
        %v1254 = vld [vmem:[#allocation11 + $0x24] sm:$0xf]
        %v1255 = vld [vmem:[#allocation11 + $0x28] sm:$0xf]
        %v1256 = vld [vmem:[#allocation11 + $0x2c] sm:$0xf]
        %v1257 = vld [vmem:[#allocation11 + $0x30] sm:$0xf]
        %v1258 = vld [vmem:[#allocation11 + $0x34] sm:$0xf]
        %v1259 = vld [vmem:[#allocation11 + $0x38] sm:$0xf]
        %v1260 = vld [vmem:[#allocation11 + $0x3c] sm:$0xf]
        %v1261 = vld [vmem:[#allocation13] sm:$0x1]
        %v1263 = vlaneseq
        %v1264 = vshrl.u32 %v1263, 7
        %v1265 = vsub.s32 0, %v1264
        %v1266 = vrot.slane %v1261, %v1265
        %v1284 = vunpack.c.l.b16 %v1245
        %v1285 = vunpack.c.l.b16 %v1246
        %v1286 = vunpack.c.l.b16 %v1247
        %v1287 = vunpack.c.l.b16 %v1248
        %v1288 = vunpack.c.l.b16 %v1249
        %v1289 = vunpack.c.l.b16 %v1250
        %v1290 = vunpack.c.l.b16 %v1251
        %v1291 = vunpack.c.l.b16 %v1252
        %v1292 = vunpack.c.l.b16 %v1253
        %v1293 = vunpack.c.l.b16 %v1254
        %v1294 = vunpack.c.l.b16 %v1255
        %v1295 = vunpack.c.l.b16 %v1256
        %v1296 = vunpack.c.l.b16 %v1257
        %v1297 = vunpack.c.l.b16 %v1258
        %v1298 = vunpack.c.l.b16 %v1259
        %v1299 = vunpack.c.l.b16 %v1260
        %v1300 = vpack.c.b16 %v1285, %v1284
        %v1301 = vpack.c.b16 %v1287, %v1286
        %v1302 = vpack.c.b16 %v1289, %v1288
        %v1303 = vpack.c.b16 %v1291, %v1290
        %v1304 = vpack.c.b16 %v1293, %v1292
        %v1305 = vpack.c.b16 %v1295, %v1294
        %v1306 = vpack.c.b16 %v1297, %v1296
        %v1307 = vpack.c.b16 %v1299, %v1298
        %1316 = vmatprep.subr.bf16.mxu0 0
        %1317 = vmatpush1.bf16.msra.mxu0 %v1300
        %1318 = vmatprep.subr.bf16.mxu0 0
        %1319 = vmatpush1.bf16.msra.mxu0 %v1301
        %1320 = vmatprep.subr.bf16.mxu0 0
        %1321 = vmatpush1.bf16.msra.mxu0 %v1302
        %1322 = vmatprep.subr.bf16.mxu0 0
        %1323 = vmatpush1.bf16.msra.mxu0 %v1303
        %1324 = vmatprep.subr.bf16.mxu0 0
        %1325 = vmatpush1.bf16.msra.mxu0 %v1304
        %1326 = vmatprep.subr.bf16.mxu0 0
        %1327 = vmatpush1.bf16.msra.mxu0 %v1305
        %1328 = vmatprep.subr.bf16.mxu0 0
        %1329 = vmatpush1.bf16.msra.mxu0 %v1306
        %1330 = vmatprep.subr.bf16.mxu0 0
        %1331 = vmatpush1.bf16.msra.mxu0 %v1307
        %1332 = vmatprep.subr.bf16.mxu0 0
        %1333 = vmatpush1.bf16.msra.mxu0 0
        %1334 = vmatprep.subr.bf16.mxu0 0
        %1335 = vmatpush1.bf16.msra.mxu0 0
        %1336 = vmatprep.subr.bf16.mxu0 0
        %1337 = vmatpush1.bf16.msra.mxu0 0
        %1338 = vmatprep.subr.bf16.mxu0 0
        %1339 = vmatpush1.bf16.msra.mxu0 0
        %1340 = vmatprep.subr.bf16.mxu0 0
        %1341 = vmatpush1.bf16.msra.mxu0 0
        %1342 = vmatprep.subr.bf16.mxu0 0
        %1343 = vmatpush1.bf16.msra.mxu0 0
        %1344 = vmatprep.subr.bf16.mxu0 0
        %1345 = vmatpush1.bf16.msra.mxu0 0
        %1346 = vmatprep.subr.bf16.mxu0 0
        %1347 = vmatpush1.bf16.msra.mxu0 0
        %1348 = vmatprep.mubr.bf16.mxu0 0
        %1349 = vmatmul.mubr.bf16.gmra.mrb[0].mxu0 %v1243
        %v1350 = vpop.f32.mrb[0].mxu0
        %v1351 = vadd.f32 %v1266, %v1350
        %v1352 = vpop.f32.mrb[0].mxu0
        %v1353 = vpop.f32.mrb[0].mxu0
        %v1354 = vadd.f32 %v1266, %v1353
        %v1355 = vpop.f32.mrb[0].mxu0
        %1356 = vmatprep.mubr.bf16.mxu0 0
        %1357 = vmatmul.mubr.bf16.gmra.mrb[0].mxu0 %v1244
        %v1358 = vpop.f32.mrb[0].mxu0
        %v1359 = vadd.f32 %v1266, %v1358
        %v1360 = vpop.f32.mrb[0].mxu0
        %v1361 = vpop.f32.mrb[0].mxu0
        %v1362 = vadd.f32 %v1266, %v1361
        %v1363 = vpop.f32.mrb[0].mxu0
        %1364 = vdwg.mxu0
        %v1365 = vmax.f32 %v1351, 0.0
        %v1366 = vmax.f32 %v1354, 0.0
        %v1367 = vmax.f32 %v1359, 0.0
        %v1368 = vmax.f32 %v1362, 0.0
        %v1369 = vpack.c.bf16 %v1366, %v1365
        %v1370 = vpack.c.bf16 %v1368, %v1367
        %v1371 = vld [vmem:[#allocation14] sm:$0xf]
        %v1372 = vld [vmem:[#allocation14 + $0x4] sm:$0xf]
        %v1373 = vld [vmem:[#allocation14 + $0x8] sm:$0xf]
        %v1374 = vld [vmem:[#allocation14 + $0xc] sm:$0xf]
        %v1375 = vld [vmem:[#allocation14 + $0x10] sm:$0xf]
        %v1376 = vld [vmem:[#allocation14 + $0x14] sm:$0xf]
        %v1377 = vld [vmem:[#allocation14 + $0x18] sm:$0xf]
        %v1378 = vld [vmem:[#allocation14 + $0x1c] sm:$0xf]
        %v1379 = vld [vmem:[#allocation14 + $0x20] sm:$0xf]
        %v1380 = vld [vmem:[#allocation14 + $0x24] sm:$0xf]
        %v1381 = vld [vmem:[#allocation14 + $0x28] sm:$0xf]
        %v1382 = vld [vmem:[#allocation14 + $0x2c] sm:$0xf]
        %v1383 = vld [vmem:[#allocation14 + $0x30] sm:$0xf]
        %v1384 = vld [vmem:[#allocation14 + $0x34] sm:$0xf]
        %v1385 = vld [vmem:[#allocation14 + $0x38] sm:$0xf]
        %v1386 = vld [vmem:[#allocation14 + $0x3c] sm:$0xf]
        %v1387 = vld [vmem:[#allocation16] sm:$0x1]
        %v1389 = vlaneseq
        %v1390 = vshrl.u32 %v1389, 7
        %v1391 = vsub.s32 0, %v1390
        %v1392 = vrot.slane %v1387, %v1391
        %v1410 = vunpack.c.l.b16 %v1371
        %v1411 = vunpack.c.l.b16 %v1372
        %v1412 = vunpack.c.l.b16 %v1373
        %v1413 = vunpack.c.l.b16 %v1374
        %v1414 = vunpack.c.l.b16 %v1375
        %v1415 = vunpack.c.l.b16 %v1376
        %v1416 = vunpack.c.l.b16 %v1377
        %v1417 = vunpack.c.l.b16 %v1378
        %v1418 = vunpack.c.l.b16 %v1379
        %v1419 = vunpack.c.l.b16 %v1380
        %v1420 = vunpack.c.l.b16 %v1381
        %v1421 = vunpack.c.l.b16 %v1382
        %v1422 = vunpack.c.l.b16 %v1383
        %v1423 = vunpack.c.l.b16 %v1384
        %v1424 = vunpack.c.l.b16 %v1385
        %v1425 = vunpack.c.l.b16 %v1386
        %v1426 = vpack.c.b16 %v1411, %v1410
        %v1427 = vpack.c.b16 %v1413, %v1412
        %v1428 = vpack.c.b16 %v1415, %v1414
        %v1429 = vpack.c.b16 %v1417, %v1416
        %v1430 = vpack.c.b16 %v1419, %v1418
        %v1431 = vpack.c.b16 %v1421, %v1420
        %v1432 = vpack.c.b16 %v1423, %v1422
        %v1433 = vpack.c.b16 %v1425, %v1424
        %1442 = vmatprep.subr.bf16.mxu0 0
        %1443 = vmatpush1.bf16.msra.mxu0 %v1426
        %1444 = vmatprep.subr.bf16.mxu0 0
        %1445 = vmatpush1.bf16.msra.mxu0 %v1427
        %1446 = vmatprep.subr.bf16.mxu0 0
        %1447 = vmatpush1.bf16.msra.mxu0 %v1428
        %1448 = vmatprep.subr.bf16.mxu0 0
        %1449 = vmatpush1.bf16.msra.mxu0 %v1429
        %1450 = vmatprep.subr.bf16.mxu0 0
        %1451 = vmatpush1.bf16.msra.mxu0 %v1430
        %1452 = vmatprep.subr.bf16.mxu0 0
        %1453 = vmatpush1.bf16.msra.mxu0 %v1431
        %1454 = vmatprep.subr.bf16.mxu0 0
        %1455 = vmatpush1.bf16.msra.mxu0 %v1432
        %1456 = vmatprep.subr.bf16.mxu0 0
        %1457 = vmatpush1.bf16.msra.mxu0 %v1433
        %1458 = vmatprep.subr.bf16.mxu0 0
        %1459 = vmatpush1.bf16.msra.mxu0 0
        %1460 = vmatprep.subr.bf16.mxu0 0
        %1461 = vmatpush1.bf16.msra.mxu0 0
        %1462 = vmatprep.subr.bf16.mxu0 0
        %1463 = vmatpush1.bf16.msra.mxu0 0
        %1464 = vmatprep.subr.bf16.mxu0 0
        %1465 = vmatpush1.bf16.msra.mxu0 0
        %1466 = vmatprep.subr.bf16.mxu0 0
        %1467 = vmatpush1.bf16.msra.mxu0 0
        %1468 = vmatprep.subr.bf16.mxu0 0
        %1469 = vmatpush1.bf16.msra.mxu0 0
        %1470 = vmatprep.subr.bf16.mxu0 0
        %1471 = vmatpush1.bf16.msra.mxu0 0
        %1472 = vmatprep.subr.bf16.mxu0 0
        %1473 = vmatpush1.bf16.msra.mxu0 0
        %1474 = vmatprep.mubr.bf16.mxu0 0
        %1475 = vmatmul.mubr.bf16.gmra.mrb[0].mxu0 %v1369
        %v1476 = vpop.f32.mrb[0].mxu0
        %v1477 = vadd.f32 %v1392, %v1476
        %v1478 = vpop.f32.mrb[0].mxu0
        %v1479 = vpop.f32.mrb[0].mxu0
        %v1480 = vadd.f32 %v1392, %v1479
        %v1481 = vpop.f32.mrb[0].mxu0
        %1482 = vmatprep.mubr.bf16.mxu0 0
        %1483 = vmatmul.mubr.bf16.gmra.mrb[0].mxu0 %v1370
        %v1484 = vpop.f32.mrb[0].mxu0
        %v1485 = vadd.f32 %v1392, %v1484
        %v1486 = vpop.f32.mrb[0].mxu0
        %v1487 = vpop.f32.mrb[0].mxu0
        %v1488 = vadd.f32 %v1392, %v1487
        %v1489 = vpop.f32.mrb[0].mxu0
        %1490 = vdwg.mxu0
        %v1491 = vadd.f32 %v1477, %v1239
        %v1492 = vadd.f32 %v1480, %v1240
        %v1493 = vadd.f32 %v1485, %v1241
        %v1494 = vadd.f32 %v1488, %v1242
        %v1495 = vpack.c.bf16 %v1492, %v1491
        %v1496 = vpack.c.bf16 %v1494, %v1493
        %v1497 = vld [vmem:[#allocation17] sm:$0xf]
        %v1498 = vld [vmem:[#allocation17 + $0x4] sm:$0xf]
        %v1499 = vld [vmem:[#allocation17 + $0x8] sm:$0xf]
        %v1500 = vld [vmem:[#allocation17 + $0xc] sm:$0xf]
        %v1501 = vld [vmem:[#allocation17 + $0x10] sm:$0xf]
        %v1502 = vld [vmem:[#allocation17 + $0x14] sm:$0xf]
        %v1503 = vld [vmem:[#allocation17 + $0x18] sm:$0xf]
        %v1504 = vld [vmem:[#allocation17 + $0x1c] sm:$0xf]
        %v1505 = vld [vmem:[#allocation17 + $0x20] sm:$0xf]
        %v1506 = vld [vmem:[#allocation17 + $0x24] sm:$0xf]
        %v1507 = vld [vmem:[#allocation17 + $0x28] sm:$0xf]
        %v1508 = vld [vmem:[#allocation17 + $0x2c] sm:$0xf]
        %v1509 = vld [vmem:[#allocation17 + $0x30] sm:$0xf]
        %v1510 = vld [vmem:[#allocation17 + $0x34] sm:$0xf]
        %v1511 = vld [vmem:[#allocation17 + $0x38] sm:$0xf]
        %v1512 = vld [vmem:[#allocation17 + $0x3c] sm:$0xf]
        %v1513 = vld [vmem:[#allocation19] sm:$0x1]
        %v1515 = vlaneseq
        %v1516 = vshrl.u32 %v1515, 7
        %v1517 = vsub.s32 0, %v1516
        %v1518 = vrot.slane %v1513, %v1517
        %v1536 = vunpack.c.l.b16 %v1497
        %v1537 = vunpack.c.l.b16 %v1498
        %v1538 = vunpack.c.l.b16 %v1499
        %v1539 = vunpack.c.l.b16 %v1500
        %v1540 = vunpack.c.l.b16 %v1501
        %v1541 = vunpack.c.l.b16 %v1502
        %v1542 = vunpack.c.l.b16 %v1503
        %v1543 = vunpack.c.l.b16 %v1504
        %v1544 = vunpack.c.l.b16 %v1505
        %v1545 = vunpack.c.l.b16 %v1506
        %v1546 = vunpack.c.l.b16 %v1507
        %v1547 = vunpack.c.l.b16 %v1508
        %v1548 = vunpack.c.l.b16 %v1509
        %v1549 = vunpack.c.l.b16 %v1510
        %v1550 = vunpack.c.l.b16 %v1511
        %v1551 = vunpack.c.l.b16 %v1512
        %v1552 = vpack.c.b16 %v1537, %v1536
        %v1553 = vpack.c.b16 %v1539, %v1538
        %v1554 = vpack.c.b16 %v1541, %v1540
        %v1555 = vpack.c.b16 %v1543, %v1542
        %v1556 = vpack.c.b16 %v1545, %v1544
        %v1557 = vpack.c.b16 %v1547, %v1546
        %v1558 = vpack.c.b16 %v1549, %v1548
        %v1559 = vpack.c.b16 %v1551, %v1550
        %1568 = vmatprep.subr.bf16.mxu0 0
        %1569 = vmatpush1.bf16.msra.mxu0 %v1552
        %1570 = vmatprep.subr.bf16.mxu0 0
        %1571 = vmatpush1.bf16.msra.mxu0 %v1553
        %1572 = vmatprep.subr.bf16.mxu0 0
        %1573 = vmatpush1.bf16.msra.mxu0 %v1554
        %1574 = vmatprep.subr.bf16.mxu0 0
        %1575 = vmatpush1.bf16.msra.mxu0 %v1555
        %1576 = vmatprep.subr.bf16.mxu0 0
        %1577 = vmatpush1.bf16.msra.mxu0 %v1556
        %1578 = vmatprep.subr.bf16.mxu0 0
        %1579 = vmatpush1.bf16.msra.mxu0 %v1557
        %1580 = vmatprep.subr.bf16.mxu0 0
        %1581 = vmatpush1.bf16.msra.mxu0 %v1558
        %1582 = vmatprep.subr.bf16.mxu0 0
        %1583 = vmatpush1.bf16.msra.mxu0 %v1559
        %1584 = vmatprep.subr.bf16.mxu0 0
        %1585 = vmatpush1.bf16.msra.mxu0 0
        %1586 = vmatprep.subr.bf16.mxu0 0
        %1587 = vmatpush1.bf16.msra.mxu0 0
        %1588 = vmatprep.subr.bf16.mxu0 0
        %1589 = vmatpush1.bf16.msra.mxu0 0
        %1590 = vmatprep.subr.bf16.mxu0 0
        %1591 = vmatpush1.bf16.msra.mxu0 0
        %1592 = vmatprep.subr.bf16.mxu0 0
        %1593 = vmatpush1.bf16.msra.mxu0 0
        %1594 = vmatprep.subr.bf16.mxu0 0
        %1595 = vmatpush1.bf16.msra.mxu0 0
        %1596 = vmatprep.subr.bf16.mxu0 0
        %1597 = vmatpush1.bf16.msra.mxu0 0
        %1598 = vmatprep.subr.bf16.mxu0 0
        %1599 = vmatpush1.bf16.msra.mxu0 0
        %1600 = vmatprep.mubr.bf16.mxu0 0
        %1601 = vmatmul.mubr.bf16.gmra.mrb[0].mxu0 %v1495
        %v1602 = vpop.f32.mrb[0].mxu0
        %v1603 = vadd.f32 %v1518, %v1602
        %v1604 = vpop.f32.mrb[0].mxu0
        %v1605 = vpop.f32.mrb[0].mxu0
        %v1606 = vadd.f32 %v1518, %v1605
        %v1607 = vpop.f32.mrb[0].mxu0
        %1608 = vmatprep.mubr.bf16.mxu0 0
        %1609 = vmatmul.mubr.bf16.gmra.mrb[0].mxu0 %v1496
        %v1610 = vpop.f32.mrb[0].mxu0
        %v1611 = vadd.f32 %v1518, %v1610
        %v1612 = vpop.f32.mrb[0].mxu0
        %v1613 = vpop.f32.mrb[0].mxu0
        %v1614 = vadd.f32 %v1518, %v1613
        %v1615 = vpop.f32.mrb[0].mxu0
        %1616 = vdwg.mxu0
        %v1617 = vlaneseq
        %v1618 = vand.u32 %v1617, 127
        %vm1619 = vcmp.lt.s32.totalorder %v1618, 64
        %v1620 = vsel %vm1619, %v1603, %v1611
        %v1621 = vsel %vm1619, %v1606, %v1614
        %1622 = vst [vmem:[%s961] sm:$0xff] %v1620
        %1623 = vst [vmem:[%s961 + $0x8] sm:$0xff] %v1621
        %v1624 = vpack.c.bf16 %v1621, %v1620
        %v1625 = vld [vmem:[#allocation20] sm:$0xf]
        %v1626 = vld [vmem:[#allocation20 + $0x4] sm:$0xf]
        %v1627 = vld [vmem:[#allocation20 + $0x8] sm:$0xf]
        %v1628 = vld [vmem:[#allocation20 + $0xc] sm:$0xf]
        %v1629 = vld [vmem:[#allocation20 + $0x10] sm:$0xf]
        %v1630 = vld [vmem:[#allocation20 + $0x14] sm:$0xf]
        %v1631 = vld [vmem:[#allocation20 + $0x18] sm:$0xf]
        %v1632 = vld [vmem:[#allocation20 + $0x1c] sm:$0xf]
        %v1633 = vld [vmem:[#allocation20 + $0x20] sm:$0xf]
        %v1634 = vld [vmem:[#allocation20 + $0x24] sm:$0xf]
        %v1635 = vld [vmem:[#allocation20 + $0x28] sm:$0xf]
        %v1636 = vld [vmem:[#allocation20 + $0x2c] sm:$0xf]
        %v1637 = vld [vmem:[#allocation20 + $0x30] sm:$0xf]
        %v1638 = vld [vmem:[#allocation20 + $0x34] sm:$0xf]
        %v1639 = vld [vmem:[#allocation20 + $0x38] sm:$0xf]
        %v1640 = vld [vmem:[#allocation20 + $0x3c] sm:$0xf]
        %v1641 = vld [vmem:[#allocation22] sm:$0x1]
        %v1643 = vlaneseq
        %v1644 = vshrl.u32 %v1643, 7
        %v1645 = vsub.s32 0, %v1644
        %v1646 = vrot.slane %v1641, %v1645
        %v1664 = vunpack.c.l.b16 %v1625
        %v1665 = vunpack.c.l.b16 %v1626
        %v1666 = vunpack.c.l.b16 %v1627
        %v1667 = vunpack.c.l.b16 %v1628
        %v1668 = vunpack.c.l.b16 %v1629
        %v1669 = vunpack.c.l.b16 %v1630
        %v1670 = vunpack.c.l.b16 %v1631
        %v1671 = vunpack.c.l.b16 %v1632
        %v1672 = vunpack.c.l.b16 %v1633
        %v1673 = vunpack.c.l.b16 %v1634
        %v1674 = vunpack.c.l.b16 %v1635
        %v1675 = vunpack.c.l.b16 %v1636
        %v1676 = vunpack.c.l.b16 %v1637
        %v1677 = vunpack.c.l.b16 %v1638
        %v1678 = vunpack.c.l.b16 %v1639
        %v1679 = vunpack.c.l.b16 %v1640
        %v1680 = vpack.c.b16 %v1665, %v1664
        %v1681 = vpack.c.b16 %v1667, %v1666
        %v1682 = vpack.c.b16 %v1669, %v1668
        %v1683 = vpack.c.b16 %v1671, %v1670
        %v1684 = vpack.c.b16 %v1673, %v1672
        %v1685 = vpack.c.b16 %v1675, %v1674
        %v1686 = vpack.c.b16 %v1677, %v1676
        %v1687 = vpack.c.b16 %v1679, %v1678
        %1696 = vmatprep.subr.bf16.mxu0 0
        %1697 = vmatpush1.bf16.msra.mxu0 %v1680
        %1698 = vmatprep.subr.bf16.mxu0 0
        %1699 = vmatpush1.bf16.msra.mxu0 %v1681
        %1700 = vmatprep.subr.bf16.mxu0 0
        %1701 = vmatpush1.bf16.msra.mxu0 %v1682
        %1702 = vmatprep.subr.bf16.mxu0 0
        %1703 = vmatpush1.bf16.msra.mxu0 %v1683
        %1704 = vmatprep.subr.bf16.mxu0 0
        %1705 = vmatpush1.bf16.msra.mxu0 %v1684
        %1706 = vmatprep.subr.bf16.mxu0 0
        %1707 = vmatpush1.bf16.msra.mxu0 %v1685
        %1708 = vmatprep.subr.bf16.mxu0 0
        %1709 = vmatpush1.bf16.msra.mxu0 %v1686
        %1710 = vmatprep.subr.bf16.mxu0 0
        %1711 = vmatpush1.bf16.msra.mxu0 %v1687
        %1712 = vmatprep.subr.bf16.mxu0 0
        %1713 = vmatpush1.bf16.msra.mxu0 0
        %1714 = vmatprep.subr.bf16.mxu0 0
        %1715 = vmatpush1.bf16.msra.mxu0 0
        %1716 = vmatprep.subr.bf16.mxu0 0
        %1717 = vmatpush1.bf16.msra.mxu0 0
        %1718 = vmatprep.subr.bf16.mxu0 0
        %1719 = vmatpush1.bf16.msra.mxu0 0
        %1720 = vmatprep.subr.bf16.mxu0 0
        %1721 = vmatpush1.bf16.msra.mxu0 0
        %1722 = vmatprep.subr.bf16.mxu0 0
        %1723 = vmatpush1.bf16.msra.mxu0 0
        %1724 = vmatprep.subr.bf16.mxu0 0
        %1725 = vmatpush1.bf16.msra.mxu0 0
        %1726 = vmatprep.subr.bf16.mxu0 0
        %1727 = vmatpush1.bf16.msra.mxu0 0
        %1728 = vmatprep.mubr.bf16.mxu0 0
        %1729 = vmatmul.mubr.bf16.gmra.mrb[0].mxu0 %v1624
        %v1730 = vpop.f32.mrb[0].mxu0
        %v1731 = vadd.f32 %v1646, %v1730
        %v1732 = vpop.f32.mrb[0].mxu0
        %v1733 = vpop.f32.mrb[0].mxu0
        %v1734 = vadd.f32 %v1646, %v1733
        %v1735 = vpop.f32.mrb[0].mxu0
        %1736 = vdwg.mxu0
        %v1737 = vmax.f32 %v1731, 0.0
        %v1738 = vmax.f32 %v1734, 0.0
        %v1739 = vpack.c.bf16 %v1738, %v1737
        %v1740 = vld [vmem:[#allocation23] sm:$0xf]
        %v1741 = vld [vmem:[#allocation23 + $0x4] sm:$0xf]
        %v1742 = vld [vmem:[#allocation23 + $0x8] sm:$0xf]
        %v1743 = vld [vmem:[#allocation23 + $0xc] sm:$0xf]
        %v1744 = vld [vmem:[#allocation23 + $0x10] sm:$0xf]
        %v1745 = vld [vmem:[#allocation23 + $0x14] sm:$0xf]
        %v1746 = vld [vmem:[#allocation23 + $0x18] sm:$0xf]
        %v1747 = vld [vmem:[#allocation23 + $0x1c] sm:$0xf]
        %v1748 = vld [vmem:[#allocation23 + $0x20] sm:$0xf]
        %v1749 = vld [vmem:[#allocation23 + $0x24] sm:$0xf]
        %v1750 = vld [vmem:[#allocation23 + $0x28] sm:$0xf]
        %v1751 = vld [vmem:[#allocation23 + $0x2c] sm:$0xf]
        %v1752 = vld [vmem:[#allocation23 + $0x30] sm:$0xf]
        %v1753 = vld [vmem:[#allocation23 + $0x34] sm:$0xf]
        %v1754 = vld [vmem:[#allocation23 + $0x38] sm:$0xf]
        %v1755 = vld [vmem:[#allocation23 + $0x3c] sm:$0xf]
        %v1756 = vld [vmem:[#allocation25] sm:$0x1]
        %v1758 = vlaneseq
        %v1759 = vshrl.u32 %v1758, 7
        %v1760 = vsub.s32 0, %v1759
        %v1761 = vrot.slane %v1756, %v1760
        %v1779 = vunpack.c.l.b16 %v1740
        %v1780 = vunpack.c.l.b16 %v1741
        %v1781 = vunpack.c.l.b16 %v1742
        %v1782 = vunpack.c.l.b16 %v1743
        %v1783 = vunpack.c.l.b16 %v1744
        %v1784 = vunpack.c.l.b16 %v1745
        %v1785 = vunpack.c.l.b16 %v1746
        %v1786 = vunpack.c.l.b16 %v1747
        %v1787 = vunpack.c.l.b16 %v1748
        %v1788 = vunpack.c.l.b16 %v1749
        %v1789 = vunpack.c.l.b16 %v1750
        %v1790 = vunpack.c.l.b16 %v1751
        %v1791 = vunpack.c.l.b16 %v1752
        %v1792 = vunpack.c.l.b16 %v1753
        %v1793 = vunpack.c.l.b16 %v1754
        %v1794 = vunpack.c.l.b16 %v1755
        %v1795 = vpack.c.b16 %v1780, %v1779
        %v1796 = vpack.c.b16 %v1782, %v1781
        %v1797 = vpack.c.b16 %v1784, %v1783
        %v1798 = vpack.c.b16 %v1786, %v1785
        %v1799 = vpack.c.b16 %v1788, %v1787
        %v1800 = vpack.c.b16 %v1790, %v1789
        %v1801 = vpack.c.b16 %v1792, %v1791
        %v1802 = vpack.c.b16 %v1794, %v1793
        %1811 = vmatprep.subr.bf16.mxu0 0
        %1812 = vmatpush1.bf16.msra.mxu0 %v1795
        %1813 = vmatprep.subr.bf16.mxu0 0
        %1814 = vmatpush1.bf16.msra.mxu0 %v1796
        %1815 = vmatprep.subr.bf16.mxu0 0
        %1816 = vmatpush1.bf16.msra.mxu0 %v1797
        %1817 = vmatprep.subr.bf16.mxu0 0
        %1818 = vmatpush1.bf16.msra.mxu0 %v1798
        %1819 = vmatprep.subr.bf16.mxu0 0
        %1820 = vmatpush1.bf16.msra.mxu0 %v1799
        %1821 = vmatprep.subr.bf16.mxu0 0
        %1822 = vmatpush1.bf16.msra.mxu0 %v1800
        %1823 = vmatprep.subr.bf16.mxu0 0
        %1824 = vmatpush1.bf16.msra.mxu0 %v1801
        %1825 = vmatprep.subr.bf16.mxu0 0
        %1826 = vmatpush1.bf16.msra.mxu0 %v1802
        %1827 = vmatprep.subr.bf16.mxu0 0
        %1828 = vmatpush1.bf16.msra.mxu0 0
        %1829 = vmatprep.subr.bf16.mxu0 0
        %1830 = vmatpush1.bf16.msra.mxu0 0
        %1831 = vmatprep.subr.bf16.mxu0 0
        %1832 = vmatpush1.bf16.msra.mxu0 0
        %1833 = vmatprep.subr.bf16.mxu0 0
        %1834 = vmatpush1.bf16.msra.mxu0 0
        %1835 = vmatprep.subr.bf16.mxu0 0
        %1836 = vmatpush1.bf16.msra.mxu0 0
        %1837 = vmatprep.subr.bf16.mxu0 0
        %1838 = vmatpush1.bf16.msra.mxu0 0
        %1839 = vmatprep.subr.bf16.mxu0 0
        %1840 = vmatpush1.bf16.msra.mxu0 0
        %1841 = vmatprep.subr.bf16.mxu0 0
        %1842 = vmatpush1.bf16.msra.mxu0 0
        %1843 = vmatprep.mubr.bf16.mxu0 0
        %1844 = vmatmul.mubr.bf16.gmra.mrb[0].mxu0 %v1739
        %v1845 = vpop.f32.mrb[0].mxu0
        %v1846 = vadd.f32 %v1761, %v1845
        %v1847 = vpop.f32.mrb[0].mxu0
        %v1848 = vpop.f32.mrb[0].mxu0
        %v1849 = vadd.f32 %v1761, %v1848
        %v1850 = vpop.f32.mrb[0].mxu0
        %1851 = vdwg.mxu0
        %v1852 = vadd.f32 %v1846, %v1620
        %v1853 = vadd.f32 %v1849, %v1621
        %v1854 = vpack.c.bf16 %v1853, %v1852
        %v1855 = vld [vmem:[#allocation26] sm:$0xf]
        %v1856 = vld [vmem:[#allocation26 + $0x4] sm:$0xf]
        %v1857 = vld [vmem:[#allocation26 + $0x8] sm:$0xf]
        %v1858 = vld [vmem:[#allocation26 + $0xc] sm:$0xf]
        %v1859 = vld [vmem:[#allocation26 + $0x10] sm:$0xf]
        %v1860 = vld [vmem:[#allocation26 + $0x14] sm:$0xf]
        %v1861 = vld [vmem:[#allocation26 + $0x18] sm:$0xf]
        %v1862 = vld [vmem:[#allocation26 + $0x1c] sm:$0xf]
        %v1863 = vld [vmem:[#allocation26 + $0x20] sm:$0xf]
        %v1864 = vld [vmem:[#allocation26 + $0x24] sm:$0xf]
        %v1865 = vld [vmem:[#allocation26 + $0x28] sm:$0xf]
        %v1866 = vld [vmem:[#allocation26 + $0x2c] sm:$0xf]
        %v1867 = vld [vmem:[#allocation26 + $0x30] sm:$0xf]
        %v1868 = vld [vmem:[#allocation26 + $0x34] sm:$0xf]
        %v1869 = vld [vmem:[#allocation26 + $0x38] sm:$0xf]
        %v1870 = vld [vmem:[#allocation26 + $0x3c] sm:$0xf]
        %v1871 = vld [vmem:[#allocation28] sm:$0x1]
        %v1873 = vlaneseq
        %v1874 = vshrl.u32 %v1873, 7
        %v1875 = vsub.s32 0, %v1874
        %v1876 = vrot.slane %v1871, %v1875
        %v1894 = vunpack.c.l.b16 %v1855
        %v1895 = vunpack.c.l.b16 %v1856
        %v1896 = vunpack.c.l.b16 %v1857
        %v1897 = vunpack.c.l.b16 %v1858
        %v1898 = vunpack.c.l.b16 %v1859
        %v1899 = vunpack.c.l.b16 %v1860
        %v1900 = vunpack.c.l.b16 %v1861
        %v1901 = vunpack.c.l.b16 %v1862
        %v1902 = vunpack.c.l.b16 %v1863
        %v1903 = vunpack.c.l.b16 %v1864
        %v1904 = vunpack.c.l.b16 %v1865
        %v1905 = vunpack.c.l.b16 %v1866
        %v1906 = vunpack.c.l.b16 %v1867
        %v1907 = vunpack.c.l.b16 %v1868
        %v1908 = vunpack.c.l.b16 %v1869
        %v1909 = vunpack.c.l.b16 %v1870
        %v1910 = vpack.c.b16 %v1895, %v1894
        %v1911 = vpack.c.b16 %v1897, %v1896
        %v1912 = vpack.c.b16 %v1899, %v1898
        %v1913 = vpack.c.b16 %v1901, %v1900
        %v1914 = vpack.c.b16 %v1903, %v1902
        %v1915 = vpack.c.b16 %v1905, %v1904
        %v1916 = vpack.c.b16 %v1907, %v1906
        %v1917 = vpack.c.b16 %v1909, %v1908
        %1926 = vmatprep.subr.bf16.mxu0 0
        %1927 = vmatpush1.bf16.msra.mxu0 %v1910
        %1928 = vmatprep.subr.bf16.mxu0 0
        %1929 = vmatpush1.bf16.msra.mxu0 %v1911
        %1930 = vmatprep.subr.bf16.mxu0 0
        %1931 = vmatpush1.bf16.msra.mxu0 %v1912
        %1932 = vmatprep.subr.bf16.mxu0 0
        %1933 = vmatpush1.bf16.msra.mxu0 %v1913
        %1934 = vmatprep.subr.bf16.mxu0 0
        %1935 = vmatpush1.bf16.msra.mxu0 %v1914
        %1936 = vmatprep.subr.bf16.mxu0 0
        %1937 = vmatpush1.bf16.msra.mxu0 %v1915
        %1938 = vmatprep.subr.bf16.mxu0 0
        %1939 = vmatpush1.bf16.msra.mxu0 %v1916
        %1940 = vmatprep.subr.bf16.mxu0 0
        %1941 = vmatpush1.bf16.msra.mxu0 %v1917
        %1942 = vmatprep.subr.bf16.mxu0 0
        %1943 = vmatpush1.bf16.msra.mxu0 0
        %1944 = vmatprep.subr.bf16.mxu0 0
        %1945 = vmatpush1.bf16.msra.mxu0 0
        %1946 = vmatprep.subr.bf16.mxu0 0
        %1947 = vmatpush1.bf16.msra.mxu0 0
        %1948 = vmatprep.subr.bf16.mxu0 0
        %1949 = vmatpush1.bf16.msra.mxu0 0
        %1950 = vmatprep.subr.bf16.mxu0 0
        %1951 = vmatpush1.bf16.msra.mxu0 0
        %1952 = vmatprep.subr.bf16.mxu0 0
        %1953 = vmatpush1.bf16.msra.mxu0 0
        %1954 = vmatprep.subr.bf16.mxu0 0
        %1955 = vmatpush1.bf16.msra.mxu0 0
        %1956 = vmatprep.subr.bf16.mxu0 0
        %1957 = vmatpush1.bf16.msra.mxu0 0
        %1958 = vmatprep.mubr.bf16.mxu0 0
        %1959 = vmatmul.mubr.bf16.gmra.mrb[0].mxu0 %v1854
        %v1960 = vpop.f32.mrb[0].mxu0
        %v1961 = vadd.f32 %v1876, %v1960
        %v1962 = vpop.f32.mrb[0].mxu0
        %v1963 = vpop.f32.mrb[0].mxu0
        %v1964 = vadd.f32 %v1876, %v1963
        %v1965 = vpop.f32.mrb[0].mxu0
        %1966 = vdwg.mxu0
        %v1967 = vmax.f32 %v1961, 0.0
        %v1968 = vmax.f32 %v1964, 0.0
        %v1969 = vpack.c.bf16 %v1968, %v1967
        %v1970 = vld [vmem:[%s17] sm:$0xf]
        %v1971 = vld [vmem:[%s17 + $0x4] sm:$0xf]
        %v1972 = vld [vmem:[%s17 + $0x8] sm:$0xf]
        %v1973 = vld [vmem:[%s17 + $0xc] sm:$0xf]
        %v1974 = vld [vmem:[%s17 + $0x10] sm:$0xf]
        %v1975 = vld [vmem:[%s17 + $0x14] sm:$0xf]
        %v1976 = vld [vmem:[%s17 + $0x18] sm:$0xf]
        %v1977 = vld [vmem:[%s17 + $0x1c] sm:$0xf]
        %v1978 = vld [vmem:[%s17 + $0x20] sm:$0xf]
        %v1979 = vld [vmem:[%s17 + $0x24] sm:$0xf]
        %v1980 = vld [vmem:[%s17 + $0x28] sm:$0xf]
        %v1981 = vld [vmem:[%s17 + $0x2c] sm:$0xf]
        %v1982 = vld [vmem:[%s17 + $0x30] sm:$0xf]
        %v1983 = vld [vmem:[%s17 + $0x34] sm:$0xf]
        %v1984 = vld [vmem:[%s17 + $0x38] sm:$0xf]
        %v1985 = vld [vmem:[%s17 + $0x3c] sm:$0xf]
        %v1986 = vld [vmem:[%s18] sm:$0x1]
        %v1988 = vlaneseq
        %v1989 = vshrl.u32 %v1988, 7
        %v1990 = vsub.s32 0, %v1989
        %v1991 = vrot.slane %v1986, %v1990
        %v2009 = vunpack.c.l.b16 %v1970
        %v2010 = vunpack.c.l.b16 %v1971
        %v2011 = vunpack.c.l.b16 %v1972
        %v2012 = vunpack.c.l.b16 %v1973
        %v2013 = vunpack.c.l.b16 %v1974
        %v2014 = vunpack.c.l.b16 %v1975
        %v2015 = vunpack.c.l.b16 %v1976
        %v2016 = vunpack.c.l.b16 %v1977
        %v2017 = vunpack.c.l.b16 %v1978
        %v2018 = vunpack.c.l.b16 %v1979
        %v2019 = vunpack.c.l.b16 %v1980
        %v2020 = vunpack.c.l.b16 %v1981
        %v2021 = vunpack.c.l.b16 %v1982
        %v2022 = vunpack.c.l.b16 %v1983
        %v2023 = vunpack.c.l.b16 %v1984
        %v2024 = vunpack.c.l.b16 %v1985
        %v2025 = vpack.c.b16 %v2010, %v2009
        %v2026 = vpack.c.b16 %v2012, %v2011
        %v2027 = vpack.c.b16 %v2014, %v2013
        %v2028 = vpack.c.b16 %v2016, %v2015
        %v2029 = vpack.c.b16 %v2018, %v2017
        %v2030 = vpack.c.b16 %v2020, %v2019
        %v2031 = vpack.c.b16 %v2022, %v2021
        %v2032 = vpack.c.b16 %v2024, %v2023
        %2041 = vmatprep.subr.bf16.mxu0 0
        %2042 = vmatpush1.bf16.msra.mxu0 %v2025
        %2043 = vmatprep.subr.bf16.mxu0 0
        %2044 = vmatpush1.bf16.msra.mxu0 %v2026
        %2045 = vmatprep.subr.bf16.mxu0 0
        %2046 = vmatpush1.bf16.msra.mxu0 %v2027
        %2047 = vmatprep.subr.bf16.mxu0 0
        %2048 = vmatpush1.bf16.msra.mxu0 %v2028
        %2049 = vmatprep.subr.bf16.mxu0 0
        %2050 = vmatpush1.bf16.msra.mxu0 %v2029
        %2051 = vmatprep.subr.bf16.mxu0 0
        %2052 = vmatpush1.bf16.msra.mxu0 %v2030
        %2053 = vmatprep.subr.bf16.mxu0 0
        %2054 = vmatpush1.bf16.msra.mxu0 %v2031
        %2055 = vmatprep.subr.bf16.mxu0 0
        %2056 = vmatpush1.bf16.msra.mxu0 %v2032
        %2057 = vmatprep.subr.bf16.mxu0 0
        %2058 = vmatpush1.bf16.msra.mxu0 0
        %2059 = vmatprep.subr.bf16.mxu0 0
        %2060 = vmatpush1.bf16.msra.mxu0 0
        %2061 = vmatprep.subr.bf16.mxu0 0
        %2062 = vmatpush1.bf16.msra.mxu0 0
        %2063 = vmatprep.subr.bf16.mxu0 0
        %2064 = vmatpush1.bf16.msra.mxu0 0
        %2065 = vmatprep.subr.bf16.mxu0 0
        %2066 = vmatpush1.bf16.msra.mxu0 0
        %2067 = vmatprep.subr.bf16.mxu0 0
        %2068 = vmatpush1.bf16.msra.mxu0 0
        %2069 = vmatprep.subr.bf16.mxu0 0
        %2070 = vmatpush1.bf16.msra.mxu0 0
        %2071 = vmatprep.subr.bf16.mxu0 0
        %2072 = vmatpush1.bf16.msra.mxu0 0
        %2073 = vmatprep.mubr.bf16.mxu0 0
        %2074 = vmatmul.mubr.bf16.gmra.mrb[0].mxu0 %v1969
        %v2075 = vpop.f32.mrb[0].mxu0
        %v2076 = vadd.f32 %v1991, %v2075
        %v2077 = vpop.f32.mrb[0].mxu0
        %v2078 = vpop.f32.mrb[0].mxu0
        %v2079 = vadd.f32 %v1991, %v2078
        %v2080 = vpop.f32.mrb[0].mxu0
        %2081 = vdwg.mxu0
        %v2082 = vadd.f32 %v2076, %v1852
        %v2083 = vadd.f32 %v2079, %v1853
        %v2084 = vpack.c.bf16 %v2083, %v2082
        %v2085 = vld [vmem:[#allocation29] sm:$0xf]
        %v2086 = vld [vmem:[#allocation29 + $0x4] sm:$0xf]
        %v2087 = vld [vmem:[#allocation29 + $0x8] sm:$0xf]
        %v2088 = vld [vmem:[#allocation29 + $0xc] sm:$0xf]
        %v2089 = vld [vmem:[#allocation29 + $0x10] sm:$0xf]
        %v2090 = vld [vmem:[#allocation29 + $0x14] sm:$0xf]
        %v2091 = vld [vmem:[#allocation29 + $0x18] sm:$0xf]
        %v2092 = vld [vmem:[#allocation29 + $0x1c] sm:$0xf]
        %v2093 = vld [vmem:[#allocation29 + $0x20] sm:$0xf]
        %v2094 = vld [vmem:[#allocation29 + $0x24] sm:$0xf]
        %v2095 = vld [vmem:[#allocation29 + $0x28] sm:$0xf]
        %v2096 = vld [vmem:[#allocation29 + $0x2c] sm:$0xf]
        %v2097 = vld [vmem:[#allocation29 + $0x30] sm:$0xf]
        %v2098 = vld [vmem:[#allocation29 + $0x34] sm:$0xf]
        %v2099 = vld [vmem:[#allocation29 + $0x38] sm:$0xf]
        %v2100 = vld [vmem:[#allocation29 + $0x3c] sm:$0xf]
        %v2101 = vld [vmem:[%s20] sm:$0x1]
        %v2103 = vlaneseq
        %v2104 = vshrl.u32 %v2103, 7
        %v2105 = vsub.s32 0, %v2104
        %v2106 = vrot.slane %v2101, %v2105
        %v2124 = vunpack.c.l.b16 %v2085
        %v2125 = vunpack.c.l.b16 %v2086
        %v2126 = vunpack.c.l.b16 %v2087
        %v2127 = vunpack.c.l.b16 %v2088
        %v2128 = vunpack.c.l.b16 %v2089
        %v2129 = vunpack.c.l.b16 %v2090
        %v2130 = vunpack.c.l.b16 %v2091
        %v2131 = vunpack.c.l.b16 %v2092
        %v2132 = vunpack.c.l.b16 %v2093
        %v2133 = vunpack.c.l.b16 %v2094
        %v2134 = vunpack.c.l.b16 %v2095
        %v2135 = vunpack.c.l.b16 %v2096
        %v2136 = vunpack.c.l.b16 %v2097
        %v2137 = vunpack.c.l.b16 %v2098
        %v2138 = vunpack.c.l.b16 %v2099
        %v2139 = vunpack.c.l.b16 %v2100
        %v2140 = vpack.c.b16 %v2125, %v2124
        %v2141 = vpack.c.b16 %v2127, %v2126
        %v2142 = vpack.c.b16 %v2129, %v2128
        %v2143 = vpack.c.b16 %v2131, %v2130
        %v2144 = vpack.c.b16 %v2133, %v2132
        %v2145 = vpack.c.b16 %v2135, %v2134
        %v2146 = vpack.c.b16 %v2137, %v2136
        %v2147 = vpack.c.b16 %v2139, %v2138
        %2156 = vmatprep.subr.bf16.mxu0 0
        %2157 = vmatpush1.bf16.msra.mxu0 %v2140
        %2158 = vmatprep.subr.bf16.mxu0 0
        %2159 = vmatpush1.bf16.msra.mxu0 %v2141
        %2160 = vmatprep.subr.bf16.mxu0 0
        %2161 = vmatpush1.bf16.msra.mxu0 %v2142
        %2162 = vmatprep.subr.bf16.mxu0 0
        %2163 = vmatpush1.bf16.msra.mxu0 %v2143
        %2164 = vmatprep.subr.bf16.mxu0 0
        %2165 = vmatpush1.bf16.msra.mxu0 %v2144
        %2166 = vmatprep.subr.bf16.mxu0 0
        %2167 = vmatpush1.bf16.msra.mxu0 %v2145
        %2168 = vmatprep.subr.bf16.mxu0 0
        %2169 = vmatpush1.bf16.msra.mxu0 %v2146
        %2170 = vmatprep.subr.bf16.mxu0 0
        %2171 = vmatpush1.bf16.msra.mxu0 %v2147
        %2172 = vmatprep.subr.bf16.mxu0 0
        %2173 = vmatpush1.bf16.msra.mxu0 0
        %2174 = vmatprep.subr.bf16.mxu0 0
        %2175 = vmatpush1.bf16.msra.mxu0 0
        %2176 = vmatprep.subr.bf16.mxu0 0
        %2177 = vmatpush1.bf16.msra.mxu0 0
        %2178 = vmatprep.subr.bf16.mxu0 0
        %2179 = vmatpush1.bf16.msra.mxu0 0
        %2180 = vmatprep.subr.bf16.mxu0 0
        %2181 = vmatpush1.bf16.msra.mxu0 0
        %2182 = vmatprep.subr.bf16.mxu0 0
        %2183 = vmatpush1.bf16.msra.mxu0 0
        %2184 = vmatprep.subr.bf16.mxu0 0
        %2185 = vmatpush1.bf16.msra.mxu0 0
        %2186 = vmatprep.subr.bf16.mxu0 0
        %2187 = vmatpush1.bf16.msra.mxu0 0
        %2188 = vmatprep.mubr.bf16.mxu0 0
        %2189 = vmatmul.mubr.bf16.gmra.mrb[0].mxu0 %v2084
        %v2190 = vpop.f32.mrb[0].mxu0
        %v2191 = vadd.f32 %v2106, %v2190
        %v2192 = vpop.f32.mrb[0].mxu0
        %v2193 = vpop.f32.mrb[0].mxu0
        %v2194 = vadd.f32 %v2106, %v2193
        %v2195 = vpop.f32.mrb[0].mxu0
        %2196 = vdwg.mxu0
        %2197 = vst [vmem:[%s968] sm:$0xff] %v2191
        %2198 = vst [vmem:[%s968 + $0x8] sm:$0xff] %v2194
        %s2199 = sand.u32 %s506, 1
        %s2200 = scalar_lea.sflag [#allocation4], %s2199
        %s2201 = sand.u32 %s506, 1
        %s2202 = smul.addr %s2201, 16
        %s2203 = scalar_lea.vmem [#allocation31], %s2202
        %s2204 = sand.u32 %s532, 1
        %s2205 = scalar_lea.sflag [#allocation33], %s2204
        %s2206 = sand.u32 %s532, 1
        %s2207 = smul.addr %s2206, 16
        %s2208 = scalar_lea.vmem [#allocation32], %s2207
        // Predicated region
        $region177: #{tpu_custom_call.1} parent=103 // pred_check
          %p2209 = pneg %p516
        $region178: #{tpu_custom_call.1} parent=103 // pred_check_branch
          %2211 = sbr.rel (%p2209) target = $region180
        $region179: #{tpu_custom_call.1} parent=103 // pred_region
          %s2212 = smul.u32 2, %s52
          %s2214 = ssub.s32 256, 256
          %2215 = vsyncadd %s2200, %s2214
          %s2216 = smul.addr %s2212, 128
          %s2217 = scalar_lea.hbm %s21, %s2216
          %s2218 = sshll.u32 %s2203, 4
          %s2219 = int_to_ptr.vmem [resolvable:$true] %s2218
          %2224 = dma.vmem_to_hbm [thread:$0]  %s2219, 256, %s2217, %s2200, 128, 128, 8
        $region180: #{tpu_custom_call.1} parent=103 // pred_fallthru
          _
        // Predicated region
        $region181: #{tpu_custom_call.1} parent=103 // pred_check
          %p2225 = pneg %p542
        $region182: #{tpu_custom_call.1} parent=103 // pred_check_branch
          %2227 = sbr.rel (%p2225) target = $region184
        $region183: #{tpu_custom_call.1} parent=103 // pred_region
          %s2228 = smul.u32 2, %s52
          %s2230 = ssub.s32 256, 256
          %2231 = vsyncadd %s2205, %s2230
          %s2232 = smul.addr %s2228, 128
          %s2233 = scalar_lea.hbm %s22, %s2232
          %s2234 = sshll.u32 %s2208, 4
          %s2235 = int_to_ptr.vmem [resolvable:$true] %s2234
          %2240 = dma.vmem_to_hbm [thread:$0]  %s2235, 256, %s2233, %s2205, 128, 128, 8
        $region184: #{tpu_custom_call.1} parent=103 // pred_fallthru
          _
      $region104: #{tpu_custom_call.1} parent=5 // pred_fallthru
        _
      %p2241 = scmp.le.s32.totalorder 2, %s47
      // Predicated region
      $region185: #{tpu_custom_call.1} parent=5 // pred_check
        %p2242 = pneg %p2241
      $region186: #{tpu_custom_call.1} parent=5 // pred_check_branch
        %2244 = sbr.rel (%p2242) target = $region188
      $region187: #{tpu_custom_call.1} parent=5 // pred_region
        %s2245 = ssub.s32 %s47, 2
        // Predicated region
        $region189: #{tpu_custom_call.1} parent=187 // pred_check
          %p2246 = pneg %p522
        $region190: #{tpu_custom_call.1} parent=187 // pred_check_branch
          %2248 = sbr.rel (%p2246) target = $region192
        $region191: #{tpu_custom_call.1} parent=187 // pred_region
          %s2249 = sand.u32 %s507, 1
          %s2250 = scalar_lea.sflag [#allocation4], %s2249
          %s2251 = sand.u32 %s507, 1
          %s2252 = smul.addr %s2251, 16
          %s2253 = scalar_lea.vmem [#allocation31], %s2252
          %2254 = dma.done %s2250, 256
        $region192: #{tpu_custom_call.1} parent=187 // pred_fallthru
          _
        // Predicated region
        $region193: #{tpu_custom_call.1} parent=187 // pred_check
          %p2255 = pneg %p548
        $region194: #{tpu_custom_call.1} parent=187 // pred_check_branch
          %2257 = sbr.rel (%p2255) target = $region196
        $region195: #{tpu_custom_call.1} parent=187 // pred_region
          %s2258 = sand.u32 %s533, 1
          %s2259 = scalar_lea.sflag [#allocation33], %s2258
          %s2260 = sand.u32 %s533, 1
          %s2261 = smul.addr %s2260, 16
          %s2262 = scalar_lea.vmem [#allocation32], %s2261
          %2263 = dma.done %s2259, 256
        $region196: #{tpu_custom_call.1} parent=187 // pred_fallthru
          _
      $region188: #{tpu_custom_call.1} parent=5 // pred_fallthru
        _
    $region6: #{tpu_custom_call.1} parent=1 // loop_footer
      %s51 = sadd.s32 1, %s47
    $region7: #{tpu_custom_call.1} parent=1 // loop_footer_branch
      %46 = sbr.rel target = $region3
    $region8: #{tpu_custom_call.1} parent=1 // loop_exit
      _
    %2264 = vsyncpa [#allocation3], 1
    %s2265 = scalar_lea.sflag [#allocation3], 1
    %2266 = vsyncpa %s2265, 1
    %2267 = vsyncpa [#allocation6], 1
    %2268 = vsyncpa [#allocation9], 1
    %2269 = vsyncpa [#allocation12], 1
    %2270 = vsyncpa [#allocation15], 1
    %2271 = vsyncpa [#allocation18], 1
    %2272 = vsyncpa [#allocation21], 1
    %2273 = vsyncpa [#allocation24], 1
    %2274 = vsyncpa [#allocation27], 1
    %2275 = vsyncpa [#allocation30], 1
    %2276 = vsyncpa [#allocation4], 1
    %s2277 = scalar_lea.sflag [#allocation4], 1
    %2278 = vsyncpa %s2277, 1
    %2279 = vsyncpa [#allocation33], 1
    %s2280 = scalar_lea.sflag [#allocation33], 1
    %2281 = vsyncpa %s2280, 1

</llo_original>
